<compile_context>
chip_gen: v7x
topology: tpu7x:2x2x1
jax: 0.10.0
libtpu: 0.0.40
codegen_flags: <defaults>
</compile_context>

<pallas_src>
import jax
import jax.numpy as jnp
from jax.experimental import pallas as pl
from jax.experimental.pallas import tpu as pltpu

NUM_CLASSES = 8
STRIDE = 4
IGNORE_INDEX = 255


# ---------------------------------------------------------------------------
# 1-D bilinear (align_corners=True) interpolation expressed as a matrix.
# ---------------------------------------------------------------------------
def _interp_matrix(out_size: int, in_size: int) -> jnp.ndarray:
    """M s.t. (M @ v) is 1-D linear interpolation of v, align_corners=True."""
    i = jnp.arange(out_size, dtype=jnp.float32)
    if out_size == 1:
        s = jnp.zeros_like(i)
    else:
        s = i * (in_size - 1) / (out_size - 1)
    i0 = jnp.clip(jnp.floor(s).astype(jnp.int32), 0, in_size - 1)
    i1 = jnp.clip(i0 + 1, 0, in_size - 1)
    w1 = s - i0.astype(jnp.float32)
    w0 = 1.0 - w1
    cols = jnp.arange(in_size, dtype=jnp.int32)[None, :]
    m = w0[:, None] * (cols == i0[:, None]).astype(jnp.float32)
    m = m + w1[:, None] * (cols == i1[:, None]).astype(jnp.float32)
    return m.astype(jnp.float32)


def _round_up(x: int, m: int) -> int:
    return ((x + m - 1) // m) * m


# ---------------------------------------------------------------------------
# Pallas kernel: per (batch, H-tile) step
#   channel-first separable bilinear upsample (banded source rows)
#   -> two-pass masked softmax cross-entropy with logits rebuilt on the fly
#      from the Cin channel maps via VPU FMAs (SMEM scalar weights).
# ---------------------------------------------------------------------------
def _seg_loss_kernel(xs_ref, w_ref, b_ref, uwT_ref, uh_ref, tgt_ref, out_ref):
    bh = uh_ref.shape[2]                    # band height (source rows)
    cin = xs_ref.shape[2] // bh
    num_classes = b_ref.shape[0]

    uwT = uwT_ref[...]                      # (Ws, W)   width-interp operator^T
    uh = uh_ref[0]                          # (TH, BH)  banded height-interp rows
    tgt = tgt_ref[0, 0].astype(jnp.int32)   # (TH, W)   int8 targets; ignore == -1

    # -- channel-first separable bilinear upsample -------------------------
    # Width: one fused MXU call, channels stacked along M.
    xsb = xs_ref[0, 0]                                              # (Cin*BH, Ws)
    mid = jnp.dot(xsb, uwT, preferred_element_type=jnp.float32)     # (Cin*BH, W)
    # Height: per-channel small-K matmul against the banded Uh tile.
    chan = [jnp.dot(uh, mid[ci * bh:(ci + 1) * bh],
                    preferred_element_type=jnp.float32)
            for ci in range(cin)]                                   # Cin x (TH, W)

    # -- two-pass softmax cross entropy -------------------------------------
    # Class logits are recomputed from the Cin resident channel maps with
    # scalar*vector FMAs; all num_classes full-res maps are never live at once.
    def logit(c):
        z = chan[0] * w_ref[0, c] + b_ref[c]
        for ci in range(1, cin):
            z = z + chan[ci] * w_ref[ci, c]
        return z

    m = logit(0)
    for c in range(1, num_classes):
        m = jnp.maximum(m, logit(c))

    s = jnp.zeros_like(m)
    picked = jnp.zeros_like(m)
    for c in range(num_classes):
        z = logit(c)
        s = s + jnp.exp(z - m)
        picked = picked + jnp.where(tgt == c, z, 0.0)

    lse = m + jnp.log(s)
    # ignore (255) was wrapped to -1 by the int8 cast; padded rows are also -1.
    # NOTE: valid targets outside [0, num_classes) would silently get
    # picked=0 (loss=lse) instead of raising like PyTorch; inputs assumed clean.
    valid = (tgt >= 0).astype(jnp.float32)
    per_pix = (lse - picked) * valid

    ls = jnp.sum(jnp.sum(per_pix, axis=1, keepdims=True), axis=0, keepdims=True)
    cv = jnp.sum(jnp.sum(valid, axis=1, keepdims=True), axis=0, keepdims=True)
    out_ref[0, 0, :, 0:1] = ls
    out_ref[0, 0, :, 1:2] = cv


# ---------------------------------------------------------------------------
# Wrapper.
# ---------------------------------------------------------------------------
def semantic_segmentation_loss(x_nchw, target, w, b,
                               stride=STRIDE, num_classes=NUM_CLASSES,
                               tile_h=None):
    B, Cin, H, W = x_nchw.shape

    # Frozen synthetic "model": strided sampling here, 1x1 conv commuted past
    # the upsample inside the kernel.
    xs = x_nchw[:, :, ::stride, ::stride]            # (B, Cin, Hs, Ws)
    Hs, Ws = xs.shape[2], xs.shape[3]

    # Output-row tiling.  H is padded up to a tile multiple; padded rows get
    # ignore targets and zero interp rows, so they contribute nothing.
    if tile_h is None:
        tile_h = min(128, _round_up(H, 8))
    Hp = _round_up(H, tile_h)
    nh = Hp // tile_h

    # Separable align_corners=True interpolation operators.
    Uh = _interp_matrix(H, Hs)                       # (H, Hs)
    UwT = _interp_matrix(W, Ws).T                    # (Ws, W)
    if Hp > H:
        Uh = jnp.concatenate([Uh, jnp.zeros((Hp - H, Hs), jnp.float32)], axis=0)

    # Per-tile source-row bands (each tile uses ~tile_h/stride + 2 rows).
    denom = max(H - 1, 1)
    lo_list, need = [], 1
    for hi in range(nh):
        i0 = min(hi * tile_h, H - 1)
        i1 = min((hi + 1) * tile_h - 1, H - 1)
        lo = max((i0 * (Hs - 1)) // denom - 1, 0)        # widened by 1 each side
        hi_row = min((i1 * (Hs - 1)) // denom + 2, Hs - 1)
        lo_list.append(lo)
        need = max(need, hi_row - lo + 1)
    BH = min(Hs, _round_up(need, 8))                     # sublane-aligned band
    starts = [min(lo, Hs - BH) for lo in lo_list]

    # Banded operands (static wrapper-side slices over the small xs / Uh).
    Uh_banded = jnp.stack(
        [Uh[hi * tile_h:(hi + 1) * tile_h, starts[hi]:starts[hi] + BH]
         for hi in range(nh)], axis=0)                            # (nh, TH, BH)
    xs_banded = jnp.stack(
        [xs[:, :, st:st + BH, :] for st in starts], axis=1)        # (B,nh,Cin,BH,Ws)
    xs_banded = xs_banded.reshape(B, nh, Cin * BH, Ws)

    # Targets as int8 (classes 0..C-1 fit; 255 wraps to -1) -> 4x less HBM/VMEM.
    tgt8 = target.astype(jnp.int8)
    if Hp > H:
        tgt8 = jnp.pad(tgt8, ((0, 0), (0, Hp - H), (0, 0)), constant_values=-1)
    tgt8 = tgt8.reshape(B, nh, tile_h, W)

    out = pl.pallas_call(
        _seg_loss_kernel,
        out_shape=jax.ShapeDtypeStruct((B, nh, 1, 2), jnp.float32),
        grid=(B, nh),
        in_specs=[
            pl.BlockSpec((1, 1, Cin * BH, Ws), lambda bi, hi: (bi, hi, 0, 0)),
            pl.BlockSpec(memory_space=pltpu.MemorySpace.SMEM),    # w (Cin, C)
            pl.BlockSpec(memory_space=pltpu.MemorySpace.SMEM),    # b (C,)
            pl.BlockSpec((Ws, W), lambda bi, hi: (0, 0)),         # UwT (grid-invariant)
            pl.BlockSpec((1, tile_h, BH), lambda bi, hi: (hi, 0, 0)),
            pl.BlockSpec((1, 1, tile_h, W), lambda bi, hi: (bi, hi, 0, 0)),
        ],
        out_specs=pl.BlockSpec((1, 1, 1, 2), lambda bi, hi: (bi, hi, 0, 0)),
        compiler_params=pltpu.CompilerParams(
            dimension_semantics=("parallel", "parallel"),
            vmem_limit_bytes=48 * 1024 * 1024),
    )(xs_banded, w.astype(jnp.float32), b.astype(jnp.float32),
      UwT, Uh_banded, tgt8)

    total = jnp.sum(out[..., 0])
    cnt = jnp.sum(out[..., 1])
    # Mean over non-ignored pixels; NaN if every pixel is ignored (same as
    # F.cross_entropy with reduction='mean').
    return total / cnt


# ---------------------------------------------------------------------------
# Pure-JAX reference (same semantics as the PyTorch module with the synthetic
# head) for a correctness check.
# ---------------------------------------------------------------------------
def reference_loss(x_nchw, target, w, b, stride=STRIDE, num_classes=NUM_CLASSES):
    B, Cin, H, W = x_nchw.shape
    xs = x_nchw[:, :, ::stride, ::stride]
    Hs, Ws = xs.shape[2], xs.shape[3]
    logits = jnp.einsum('bchw,ck->bkhw', xs, w) + b.reshape(1, num_classes, 1, 1)
    Uh = _interp_matrix(H, Hs)
    Uw = _interp_matrix(W, Ws)
    up = jnp.einsum('hs,wt,bkst->bkhw', Uh, Uw, logits)     # bilinear, align_corners
    logp = jax.nn.log_softmax(up, axis=1)
    valid = (target != IGNORE_INDEX)
    tgt_safe = jnp.where(valid, target, 0)
    logp_t = jnp.take_along_axis(jnp.moveaxis(logp, 1, -1),
                                 tgt_safe[..., None], axis=-1)[..., 0]
    return -jnp.sum(logp_t * valid) / jnp.sum(valid)


if __name__ == "__main__":
    key = jax.random.PRNGKey(0)
    kx, kt, km, kw, kb = jax.random.split(key, 5)

    B, Cin, H, W = 2, 3, 32, 32
    x = jax.random.normal(kx, (B, Cin, H, W), dtype=jnp.float32)
    target = jax.random.randint(kt, (B, H, W), 0, NUM_CLASSES)
    ignore = jax.random.bernoulli(km, 0.1, (B, H, W))
    target = jnp.where(ignore, IGNORE_INDEX, target).astype(jnp.int32)

    # Deterministic synthetic "model" parameters (frozen 1x1 stride-4 conv head).
    w = jax.random.normal(kw, (Cin, NUM_CLASSES), dtype=jnp.float32) * 0.1
    b = jax.random.normal(kb, (NUM_CLASSES,), dtype=jnp.float32) * 0.1

    # tile_h=16 exercises the multi-tile, banded (batch, H-tile) grid at toy size.
    loss = semantic_segmentation_loss(x, target, w, b, tile_h=16)
    loss = jax.block_until_ready(loss)

    ref = jax.block_until_ready(reference_loss(x, target, w, b))
    assert jnp.isfinite(loss), "loss is not finite"
    assert abs(float(loss) - float(ref)) < 1e-3, (float(loss), float(ref))

    print("KERNEL_OK")
</pallas_src>

<mosaic_0001>
module attributes {stable_mosaic.version = 11 : i64} {
  func.func @_seg_loss_kernel(%arg0: i32, %arg1: i32, %arg2: memref<1x1x24x8xf32, #tpu.memory_space<vmem>>, %arg3: memref<3x8xf32, #tpu.memory_space<smem>>, %arg4: memref<8xf32, #tpu.memory_space<smem>>, %arg5: memref<8x32xf32, #tpu.memory_space<vmem>>, %arg6: memref<1x16x8xf32, #tpu.memory_space<vmem>>, %arg7: memref<1x1x16x32xi8, #tpu.memory_space<vmem>>, %arg8: memref<1x1x1x2xf32, #tpu.memory_space<vmem>>) attributes {dimension_semantics = [#tpu.dimension_semantics<parallel>, #tpu.dimension_semantics<parallel>], iteration_bounds = array<i64: 2, 2>, scalar_prefetch = 0 : i64, scratch_operands = 0 : i64, tpu.core_type = #tpu.core_type<tc>, window_params = [{transform_indices = @transform_0, window_bounds = array<i64: 1, 1, 24, 8>}, {transform_indices = @transform_1, window_bounds = array<i64: 3, 8>}, {transform_indices = @transform_2, window_bounds = array<i64: 8>}, {pipeline_mode = #tpu.pipeline_mode<synchronous>, transform_indices = @transform_3, window_bounds = array<i64: 8, 32>}, {transform_indices = @transform_4, window_bounds = array<i64: 1, 16, 8>}, {transform_indices = @transform_5, window_bounds = array<i64: 1, 1, 16, 32>}, {transform_indices = @transform_6, window_bounds = array<i64: 1, 1, 1, 2>}]} {
    %c0 = arith.constant 0 : index
    %c0_0 = arith.constant 0 : index
    %0 = vector.load %arg5[%c0, %c0_0] : memref<8x32xf32, #tpu.memory_space<vmem>>, vector<8x32xf32>
    %c0_1 = arith.constant 0 : index
    %c0_2 = arith.constant 0 : index
    %c0_3 = arith.constant 0 : index
    %1 = vector.load %arg6[%c0_1, %c0_2, %c0_3] : memref<1x16x8xf32, #tpu.memory_space<vmem>>, vector<1x16x8xf32>
    %2 = vector.shape_cast %1 : vector<1x16x8xf32> to vector<16x8xf32>
    %c0_4 = arith.constant 0 : index
    %c0_5 = arith.constant 0 : index
    %c0_6 = arith.constant 0 : index
    %c0_7 = arith.constant 0 : index
    %3 = vector.load %arg7[%c0_4, %c0_5, %c0_6, %c0_7] : memref<1x1x16x32xi8, #tpu.memory_space<vmem>>, vector<1x1x16x32xi8>
    %4 = vector.shape_cast %3 : vector<1x1x16x32xi8> to vector<16x32xi8>
    %5 = arith.extsi %4 : vector<16x32xi8> to vector<16x32xi32>
    %c0_8 = arith.constant 0 : index
    %c0_9 = arith.constant 0 : index
    %c0_10 = arith.constant 0 : index
    %c0_11 = arith.constant 0 : index
    %6 = vector.load %arg2[%c0_8, %c0_9, %c0_10, %c0_11] : memref<1x1x24x8xf32, #tpu.memory_space<vmem>>, vector<1x1x24x8xf32>
    %7 = vector.shape_cast %6 : vector<1x1x24x8xf32> to vector<24x8xf32>
    %cst = arith.constant dense<0.000000e+00> : vector<24x32xf32>
    %8 = tpu.matmul %7, %0, %cst {dimension_numbers = #tpu.dot_dimension_numbers<[1], [0], [0], [1], [0, 0, 1, 1], [], []>} : vector<24x8xf32>, vector<8x32xf32>, vector<24x32xf32> -> vector<24x32xf32>
    %9 = vector.extract_strided_slice %8 {offsets = [0, 0], sizes = [8, 32], strides = [1, 1]} : vector<24x32xf32> to vector<8x32xf32>
    %cst_12 = arith.constant dense<0.000000e+00> : vector<16x32xf32>
    %10 = tpu.matmul %2, %9, %cst_12 {dimension_numbers = #tpu.dot_dimension_numbers<[1], [0], [0], [1], [0, 0, 1, 1], [], []>} : vector<16x8xf32>, vector<8x32xf32>, vector<16x32xf32> -> vector<16x32xf32>
    %11 = vector.extract_strided_slice %8 {offsets = [8, 0], sizes = [8, 32], strides = [1, 1]} : vector<24x32xf32> to vector<8x32xf32>
    %cst_13 = arith.constant dense<0.000000e+00> : vector<16x32xf32>
    %12 = tpu.matmul %2, %11, %cst_13 {dimension_numbers = #tpu.dot_dimension_numbers<[1], [0], [0], [1], [0, 0, 1, 1], [], []>} : vector<16x8xf32>, vector<8x32xf32>, vector<16x32xf32> -> vector<16x32xf32>
    %13 = vector.extract_strided_slice %8 {offsets = [16, 0], sizes = [8, 32], strides = [1, 1]} : vector<24x32xf32> to vector<8x32xf32>
    %cst_14 = arith.constant dense<0.000000e+00> : vector<16x32xf32>
    %14 = tpu.matmul %2, %13, %cst_14 {dimension_numbers = #tpu.dot_dimension_numbers<[1], [0], [0], [1], [0, 0, 1, 1], [], []>} : vector<16x8xf32>, vector<8x32xf32>, vector<16x32xf32> -> vector<16x32xf32>
    %c0_15 = arith.constant 0 : index
    %c0_16 = arith.constant 0 : index
    %15 = memref.load %arg3[%c0_15, %c0_16] : memref<3x8xf32, #tpu.memory_space<smem>>
    %16 = vector.broadcast %15 : f32 to vector<16x32xf32>
    %17 = arith.mulf %10, %16 : vector<16x32xf32>
    %c0_17 = arith.constant 0 : index
    %18 = memref.load %arg4[%c0_17] : memref<8xf32, #tpu.memory_space<smem>>
    %19 = vector.broadcast %18 : f32 to vector<16x32xf32>
    %20 = arith.addf %17, %19 : vector<16x32xf32>
    %c1 = arith.constant 1 : index
    %c0_18 = arith.constant 0 : index
    %21 = memref.load %arg3[%c1, %c0_18] : memref<3x8xf32, #tpu.memory_space<smem>>
    %22 = vector.broadcast %21 : f32 to vector<16x32xf32>
    %23 = arith.mulf %12, %22 : vector<16x32xf32>
    %24 = arith.addf %20, %23 : vector<16x32xf32>
    %c2 = arith.constant 2 : index
    %c0_19 = arith.constant 0 : index
    %25 = memref.load %arg3[%c2, %c0_19] : memref<3x8xf32, #tpu.memory_space<smem>>
    %26 = vector.broadcast %25 : f32 to vector<16x32xf32>
    %27 = arith.mulf %14, %26 : vector<16x32xf32>
    %28 = arith.addf %24, %27 : vector<16x32xf32>
    %c0_20 = arith.constant 0 : index
    %c1_21 = arith.constant 1 : index
    %29 = memref.load %arg3[%c0_20, %c1_21] : memref<3x8xf32, #tpu.memory_space<smem>>
    %30 = vector.broadcast %29 : f32 to vector<16x32xf32>
    %31 = arith.mulf %10, %30 : vector<16x32xf32>
    %c1_22 = arith.constant 1 : index
    %32 = memref.load %arg4[%c1_22] : memref<8xf32, #tpu.memory_space<smem>>
    %33 = vector.broadcast %32 : f32 to vector<16x32xf32>
    %34 = arith.addf %31, %33 : vector<16x32xf32>
    %c1_23 = arith.constant 1 : index
    %c1_24 = arith.constant 1 : index
    %35 = memref.load %arg3[%c1_23, %c1_24] : memref<3x8xf32, #tpu.memory_space<smem>>
    %36 = vector.broadcast %35 : f32 to vector<16x32xf32>
    %37 = arith.mulf %12, %36 : vector<16x32xf32>
    %38 = arith.addf %34, %37 : vector<16x32xf32>
    %c2_25 = arith.constant 2 : index
    %c1_26 = arith.constant 1 : index
    %39 = memref.load %arg3[%c2_25, %c1_26] : memref<3x8xf32, #tpu.memory_space<smem>>
    %40 = vector.broadcast %39 : f32 to vector<16x32xf32>
    %41 = arith.mulf %14, %40 : vector<16x32xf32>
    %42 = arith.addf %38, %41 : vector<16x32xf32>
    %43 = arith.maximumf %28, %42 : vector<16x32xf32>
    %c0_27 = arith.constant 0 : index
    %c2_28 = arith.constant 2 : index
    %44 = memref.load %arg3[%c0_27, %c2_28] : memref<3x8xf32, #tpu.memory_space<smem>>
    %45 = vector.broadcast %44 : f32 to vector<16x32xf32>
    %46 = arith.mulf %10, %45 : vector<16x32xf32>
    %c2_29 = arith.constant 2 : index
    %47 = memref.load %arg4[%c2_29] : memref<8xf32, #tpu.memory_space<smem>>
    %48 = vector.broadcast %47 : f32 to vector<16x32xf32>
    %49 = arith.addf %46, %48 : vector<16x32xf32>
    %c1_30 = arith.constant 1 : index
    %c2_31 = arith.constant 2 : index
    %50 = memref.load %arg3[%c1_30, %c2_31] : memref<3x8xf32, #tpu.memory_space<smem>>
    %51 = vector.broadcast %50 : f32 to vector<16x32xf32>
    %52 = arith.mulf %12, %51 : vector<16x32xf32>
    %53 = arith.addf %49, %52 : vector<16x32xf32>
    %c2_32 = arith.constant 2 : index
    %c2_33 = arith.constant 2 : index
    %54 = memref.load %arg3[%c2_32, %c2_33] : memref<3x8xf32, #tpu.memory_space<smem>>
    %55 = vector.broadcast %54 : f32 to vector<16x32xf32>
    %56 = arith.mulf %14, %55 : vector<16x32xf32>
    %57 = arith.addf %53, %56 : vector<16x32xf32>
    %58 = arith.maximumf %43, %57 : vector<16x32xf32>
    %c0_34 = arith.constant 0 : index
    %c3 = arith.constant 3 : index
    %59 = memref.load %arg3[%c0_34, %c3] : memref<3x8xf32, #tpu.memory_space<smem>>
    %60 = vector.broadcast %59 : f32 to vector<16x32xf32>
    %61 = arith.mulf %10, %60 : vector<16x32xf32>
    %c3_35 = arith.constant 3 : index
    %62 = memref.load %arg4[%c3_35] : memref<8xf32, #tpu.memory_space<smem>>
    %63 = vector.broadcast %62 : f32 to vector<16x32xf32>
    %64 = arith.addf %61, %63 : vector<16x32xf32>
    %c1_36 = arith.constant 1 : index
    %c3_37 = arith.constant 3 : index
    %65 = memref.load %arg3[%c1_36, %c3_37] : memref<3x8xf32, #tpu.memory_space<smem>>
    %66 = vector.broadcast %65 : f32 to vector<16x32xf32>
    %67 = arith.mulf %12, %66 : vector<16x32xf32>
    %68 = arith.addf %64, %67 : vector<16x32xf32>
    %c2_38 = arith.constant 2 : index
    %c3_39 = arith.constant 3 : index
    %69 = memref.load %arg3[%c2_38, %c3_39] : memref<3x8xf32, #tpu.memory_space<smem>>
    %70 = vector.broadcast %69 : f32 to vector<16x32xf32>
    %71 = arith.mulf %14, %70 : vector<16x32xf32>
    %72 = arith.addf %68, %71 : vector<16x32xf32>
    %73 = arith.maximumf %58, %72 : vector<16x32xf32>
    %c0_40 = arith.constant 0 : index
    %c4 = arith.constant 4 : index
    %74 = memref.load %arg3[%c0_40, %c4] : memref<3x8xf32, #tpu.memory_space<smem>>
    %75 = vector.broadcast %74 : f32 to vector<16x32xf32>
    %76 = arith.mulf %10, %75 : vector<16x32xf32>
    %c4_41 = arith.constant 4 : index
    %77 = memref.load %arg4[%c4_41] : memref<8xf32, #tpu.memory_space<smem>>
    %78 = vector.broadcast %77 : f32 to vector<16x32xf32>
    %79 = arith.addf %76, %78 : vector<16x32xf32>
    %c1_42 = arith.constant 1 : index
    %c4_43 = arith.constant 4 : index
    %80 = memref.load %arg3[%c1_42, %c4_43] : memref<3x8xf32, #tpu.memory_space<smem>>
    %81 = vector.broadcast %80 : f32 to vector<16x32xf32>
    %82 = arith.mulf %12, %81 : vector<16x32xf32>
    %83 = arith.addf %79, %82 : vector<16x32xf32>
    %c2_44 = arith.constant 2 : index
    %c4_45 = arith.constant 4 : index
    %84 = memref.load %arg3[%c2_44, %c4_45] : memref<3x8xf32, #tpu.memory_space<smem>>
    %85 = vector.broadcast %84 : f32 to vector<16x32xf32>
    %86 = arith.mulf %14, %85 : vector<16x32xf32>
    %87 = arith.addf %83, %86 : vector<16x32xf32>
    %88 = arith.maximumf %73, %87 : vector<16x32xf32>
    %c0_46 = arith.constant 0 : index
    %c5 = arith.constant 5 : index
    %89 = memref.load %arg3[%c0_46, %c5] : memref<3x8xf32, #tpu.memory_space<smem>>
    %90 = vector.broadcast %89 : f32 to vector<16x32xf32>
    %91 = arith.mulf %10, %90 : vector<16x32xf32>
    %c5_47 = arith.constant 5 : index
    %92 = memref.load %arg4[%c5_47] : memref<8xf32, #tpu.memory_space<smem>>
    %93 = vector.broadcast %92 : f32 to vector<16x32xf32>
    %94 = arith.addf %91, %93 : vector<16x32xf32>
    %c1_48 = arith.constant 1 : index
    %c5_49 = arith.constant 5 : index
    %95 = memref.load %arg3[%c1_48, %c5_49] : memref<3x8xf32, #tpu.memory_space<smem>>
    %96 = vector.broadcast %95 : f32 to vector<16x32xf32>
    %97 = arith.mulf %12, %96 : vector<16x32xf32>
    %98 = arith.addf %94, %97 : vector<16x32xf32>
    %c2_50 = arith.constant 2 : index
    %c5_51 = arith.constant 5 : index
    %99 = memref.load %arg3[%c2_50, %c5_51] : memref<3x8xf32, #tpu.memory_space<smem>>
    %100 = vector.broadcast %99 : f32 to vector<16x32xf32>
    %101 = arith.mulf %14, %100 : vector<16x32xf32>
    %102 = arith.addf %98, %101 : vector<16x32xf32>
    %103 = arith.maximumf %88, %102 : vector<16x32xf32>
    %c0_52 = arith.constant 0 : index
    %c6 = arith.constant 6 : index
    %104 = memref.load %arg3[%c0_52, %c6] : memref<3x8xf32, #tpu.memory_space<smem>>
    %105 = vector.broadcast %104 : f32 to vector<16x32xf32>
    %106 = arith.mulf %10, %105 : vector<16x32xf32>
    %c6_53 = arith.constant 6 : index
    %107 = memref.load %arg4[%c6_53] : memref<8xf32, #tpu.memory_space<smem>>
    %108 = vector.broadcast %107 : f32 to vector<16x32xf32>
    %109 = arith.addf %106, %108 : vector<16x32xf32>
    %c1_54 = arith.constant 1 : index
    %c6_55 = arith.constant 6 : index
    %110 = memref.load %arg3[%c1_54, %c6_55] : memref<3x8xf32, #tpu.memory_space<smem>>
    %111 = vector.broadcast %110 : f32 to vector<16x32xf32>
    %112 = arith.mulf %12, %111 : vector<16x32xf32>
    %113 = arith.addf %109, %112 : vector<16x32xf32>
    %c2_56 = arith.constant 2 : index
    %c6_57 = arith.constant 6 : index
    %114 = memref.load %arg3[%c2_56, %c6_57] : memref<3x8xf32, #tpu.memory_space<smem>>
    %115 = vector.broadcast %114 : f32 to vector<16x32xf32>
    %116 = arith.mulf %14, %115 : vector<16x32xf32>
    %117 = arith.addf %113, %116 : vector<16x32xf32>
    %118 = arith.maximumf %103, %117 : vector<16x32xf32>
    %c0_58 = arith.constant 0 : index
    %c7 = arith.constant 7 : index
    %119 = memref.load %arg3[%c0_58, %c7] : memref<3x8xf32, #tpu.memory_space<smem>>
    %120 = vector.broadcast %119 : f32 to vector<16x32xf32>
    %121 = arith.mulf %10, %120 : vector<16x32xf32>
    %c7_59 = arith.constant 7 : index
    %122 = memref.load %arg4[%c7_59] : memref<8xf32, #tpu.memory_space<smem>>
    %123 = vector.broadcast %122 : f32 to vector<16x32xf32>
    %124 = arith.addf %121, %123 : vector<16x32xf32>
    %c1_60 = arith.constant 1 : index
    %c7_61 = arith.constant 7 : index
    %125 = memref.load %arg3[%c1_60, %c7_61] : memref<3x8xf32, #tpu.memory_space<smem>>
    %126 = vector.broadcast %125 : f32 to vector<16x32xf32>
    %127 = arith.mulf %12, %126 : vector<16x32xf32>
    %128 = arith.addf %124, %127 : vector<16x32xf32>
    %c2_62 = arith.constant 2 : index
    %c7_63 = arith.constant 7 : index
    %129 = memref.load %arg3[%c2_62, %c7_63] : memref<3x8xf32, #tpu.memory_space<smem>>
    %130 = vector.broadcast %129 : f32 to vector<16x32xf32>
    %131 = arith.mulf %14, %130 : vector<16x32xf32>
    %132 = arith.addf %128, %131 : vector<16x32xf32>
    %133 = arith.maximumf %118, %132 : vector<16x32xf32>
    %cst_64 = arith.constant 0.000000e+00 : f32
    %134 = vector.broadcast %cst_64 : f32 to vector<16x32xf32>
    %cst_65 = arith.constant 0.000000e+00 : f32
    %135 = vector.broadcast %cst_65 : f32 to vector<16x32xf32>
    %c0_66 = arith.constant 0 : index
    %c0_67 = arith.constant 0 : index
    %136 = memref.load %arg3[%c0_66, %c0_67] : memref<3x8xf32, #tpu.memory_space<smem>>
    %137 = vector.broadcast %136 : f32 to vector<16x32xf32>
    %138 = arith.mulf %10, %137 : vector<16x32xf32>
    %c0_68 = arith.constant 0 : index
    %139 = memref.load %arg4[%c0_68] : memref<8xf32, #tpu.memory_space<smem>>
    %140 = vector.broadcast %139 : f32 to vector<16x32xf32>
    %141 = arith.addf %138, %140 : vector<16x32xf32>
    %c1_69 = arith.constant 1 : index
    %c0_70 = arith.constant 0 : index
    %142 = memref.load %arg3[%c1_69, %c0_70] : memref<3x8xf32, #tpu.memory_space<smem>>
    %143 = vector.broadcast %142 : f32 to vector<16x32xf32>
    %144 = arith.mulf %12, %143 : vector<16x32xf32>
    %145 = arith.addf %141, %144 : vector<16x32xf32>
    %c2_71 = arith.constant 2 : index
    %c0_72 = arith.constant 0 : index
    %146 = memref.load %arg3[%c2_71, %c0_72] : memref<3x8xf32, #tpu.memory_space<smem>>
    %147 = vector.broadcast %146 : f32 to vector<16x32xf32>
    %148 = arith.mulf %14, %147 : vector<16x32xf32>
    %149 = arith.addf %145, %148 : vector<16x32xf32>
    %150 = arith.subf %149, %133 : vector<16x32xf32>
    %151 = math.exp %150 : vector<16x32xf32>
    %152 = arith.addf %134, %151 : vector<16x32xf32>
    %c0_i32 = arith.constant 0 : i32
    %153 = vector.broadcast %c0_i32 : i32 to vector<16x32xi32>
    %154 = arith.cmpi eq, %5, %153 : vector<16x32xi32>
    %cst_73 = arith.constant 0.000000e+00 : f32
    %155 = vector.broadcast %cst_73 : f32 to vector<16x32xf32>
    %156 = arith.select %154, %149, %155 : vector<16x32xi1>, vector<16x32xf32>
    %157 = arith.addf %135, %156 : vector<16x32xf32>
    %c0_74 = arith.constant 0 : index
    %c1_75 = arith.constant 1 : index
    %158 = memref.load %arg3[%c0_74, %c1_75] : memref<3x8xf32, #tpu.memory_space<smem>>
    %159 = vector.broadcast %158 : f32 to vector<16x32xf32>
    %160 = arith.mulf %10, %159 : vector<16x32xf32>
    %c1_76 = arith.constant 1 : index
    %161 = memref.load %arg4[%c1_76] : memref<8xf32, #tpu.memory_space<smem>>
    %162 = vector.broadcast %161 : f32 to vector<16x32xf32>
    %163 = arith.addf %160, %162 : vector<16x32xf32>
    %c1_77 = arith.constant 1 : index
    %c1_78 = arith.constant 1 : index
    %164 = memref.load %arg3[%c1_77, %c1_78] : memref<3x8xf32, #tpu.memory_space<smem>>
    %165 = vector.broadcast %164 : f32 to vector<16x32xf32>
    %166 = arith.mulf %12, %165 : vector<16x32xf32>
    %167 = arith.addf %163, %166 : vector<16x32xf32>
    %c2_79 = arith.constant 2 : index
    %c1_80 = arith.constant 1 : index
    %168 = memref.load %arg3[%c2_79, %c1_80] : memref<3x8xf32, #tpu.memory_space<smem>>
    %169 = vector.broadcast %168 : f32 to vector<16x32xf32>
    %170 = arith.mulf %14, %169 : vector<16x32xf32>
    %171 = arith.addf %167, %170 : vector<16x32xf32>
    %172 = arith.subf %171, %133 : vector<16x32xf32>
    %173 = math.exp %172 : vector<16x32xf32>
    %174 = arith.addf %152, %173 : vector<16x32xf32>
    %c1_i32 = arith.constant 1 : i32
    %175 = vector.broadcast %c1_i32 : i32 to vector<16x32xi32>
    %176 = arith.cmpi eq, %5, %175 : vector<16x32xi32>
    %cst_81 = arith.constant 0.000000e+00 : f32
    %177 = vector.broadcast %cst_81 : f32 to vector<16x32xf32>
    %178 = arith.select %176, %171, %177 : vector<16x32xi1>, vector<16x32xf32>
    %179 = arith.addf %157, %178 : vector<16x32xf32>
    %c0_82 = arith.constant 0 : index
    %c2_83 = arith.constant 2 : index
    %180 = memref.load %arg3[%c0_82, %c2_83] : memref<3x8xf32, #tpu.memory_space<smem>>
    %181 = vector.broadcast %180 : f32 to vector<16x32xf32>
    %182 = arith.mulf %10, %181 : vector<16x32xf32>
    %c2_84 = arith.constant 2 : index
    %183 = memref.load %arg4[%c2_84] : memref<8xf32, #tpu.memory_space<smem>>
    %184 = vector.broadcast %183 : f32 to vector<16x32xf32>
    %185 = arith.addf %182, %184 : vector<16x32xf32>
    %c1_85 = arith.constant 1 : index
    %c2_86 = arith.constant 2 : index
    %186 = memref.load %arg3[%c1_85, %c2_86] : memref<3x8xf32, #tpu.memory_space<smem>>
    %187 = vector.broadcast %186 : f32 to vector<16x32xf32>
    %188 = arith.mulf %12, %187 : vector<16x32xf32>
    %189 = arith.addf %185, %188 : vector<16x32xf32>
    %c2_87 = arith.constant 2 : index
    %c2_88 = arith.constant 2 : index
    %190 = memref.load %arg3[%c2_87, %c2_88] : memref<3x8xf32, #tpu.memory_space<smem>>
    %191 = vector.broadcast %190 : f32 to vector<16x32xf32>
    %192 = arith.mulf %14, %191 : vector<16x32xf32>
    %193 = arith.addf %189, %192 : vector<16x32xf32>
    %194 = arith.subf %193, %133 : vector<16x32xf32>
    %195 = math.exp %194 : vector<16x32xf32>
    %196 = arith.addf %174, %195 : vector<16x32xf32>
    %c2_i32 = arith.constant 2 : i32
    %197 = vector.broadcast %c2_i32 : i32 to vector<16x32xi32>
    %198 = arith.cmpi eq, %5, %197 : vector<16x32xi32>
    %cst_89 = arith.constant 0.000000e+00 : f32
    %199 = vector.broadcast %cst_89 : f32 to vector<16x32xf32>
    %200 = arith.select %198, %193, %199 : vector<16x32xi1>, vector<16x32xf32>
    %201 = arith.addf %179, %200 : vector<16x32xf32>
    %c0_90 = arith.constant 0 : index
    %c3_91 = arith.constant 3 : index
    %202 = memref.load %arg3[%c0_90, %c3_91] : memref<3x8xf32, #tpu.memory_space<smem>>
    %203 = vector.broadcast %202 : f32 to vector<16x32xf32>
    %204 = arith.mulf %10, %203 : vector<16x32xf32>
    %c3_92 = arith.constant 3 : index
    %205 = memref.load %arg4[%c3_92] : memref<8xf32, #tpu.memory_space<smem>>
    %206 = vector.broadcast %205 : f32 to vector<16x32xf32>
    %207 = arith.addf %204, %206 : vector<16x32xf32>
    %c1_93 = arith.constant 1 : index
    %c3_94 = arith.constant 3 : index
    %208 = memref.load %arg3[%c1_93, %c3_94] : memref<3x8xf32, #tpu.memory_space<smem>>
    %209 = vector.broadcast %208 : f32 to vector<16x32xf32>
    %210 = arith.mulf %12, %209 : vector<16x32xf32>
    %211 = arith.addf %207, %210 : vector<16x32xf32>
    %c2_95 = arith.constant 2 : index
    %c3_96 = arith.constant 3 : index
    %212 = memref.load %arg3[%c2_95, %c3_96] : memref<3x8xf32, #tpu.memory_space<smem>>
    %213 = vector.broadcast %212 : f32 to vector<16x32xf32>
    %214 = arith.mulf %14, %213 : vector<16x32xf32>
    %215 = arith.addf %211, %214 : vector<16x32xf32>
    %216 = arith.subf %215, %133 : vector<16x32xf32>
    %217 = math.exp %216 : vector<16x32xf32>
    %218 = arith.addf %196, %217 : vector<16x32xf32>
    %c3_i32 = arith.constant 3 : i32
    %219 = vector.broadcast %c3_i32 : i32 to vector<16x32xi32>
    %220 = arith.cmpi eq, %5, %219 : vector<16x32xi32>
    %cst_97 = arith.constant 0.000000e+00 : f32
    %221 = vector.broadcast %cst_97 : f32 to vector<16x32xf32>
    %222 = arith.select %220, %215, %221 : vector<16x32xi1>, vector<16x32xf32>
    %223 = arith.addf %201, %222 : vector<16x32xf32>
    %c0_98 = arith.constant 0 : index
    %c4_99 = arith.constant 4 : index
    %224 = memref.load %arg3[%c0_98, %c4_99] : memref<3x8xf32, #tpu.memory_space<smem>>
    %225 = vector.broadcast %224 : f32 to vector<16x32xf32>
    %226 = arith.mulf %10, %225 : vector<16x32xf32>
    %c4_100 = arith.constant 4 : index
    %227 = memref.load %arg4[%c4_100] : memref<8xf32, #tpu.memory_space<smem>>
    %228 = vector.broadcast %227 : f32 to vector<16x32xf32>
    %229 = arith.addf %226, %228 : vector<16x32xf32>
    %c1_101 = arith.constant 1 : index
    %c4_102 = arith.constant 4 : index
    %230 = memref.load %arg3[%c1_101, %c4_102] : memref<3x8xf32, #tpu.memory_space<smem>>
    %231 = vector.broadcast %230 : f32 to vector<16x32xf32>
    %232 = arith.mulf %12, %231 : vector<16x32xf32>
    %233 = arith.addf %229, %232 : vector<16x32xf32>
    %c2_103 = arith.constant 2 : index
    %c4_104 = arith.constant 4 : index
    %234 = memref.load %arg3[%c2_103, %c4_104] : memref<3x8xf32, #tpu.memory_space<smem>>
    %235 = vector.broadcast %234 : f32 to vector<16x32xf32>
    %236 = arith.mulf %14, %235 : vector<16x32xf32>
    %237 = arith.addf %233, %236 : vector<16x32xf32>
    %238 = arith.subf %237, %133 : vector<16x32xf32>
    %239 = math.exp %238 : vector<16x32xf32>
    %240 = arith.addf %218, %239 : vector<16x32xf32>
    %c4_i32 = arith.constant 4 : i32
    %241 = vector.broadcast %c4_i32 : i32 to vector<16x32xi32>
    %242 = arith.cmpi eq, %5, %241 : vector<16x32xi32>
    %cst_105 = arith.constant 0.000000e+00 : f32
    %243 = vector.broadcast %cst_105 : f32 to vector<16x32xf32>
    %244 = arith.select %242, %237, %243 : vector<16x32xi1>, vector<16x32xf32>
    %245 = arith.addf %223, %244 : vector<16x32xf32>
    %c0_106 = arith.constant 0 : index
    %c5_107 = arith.constant 5 : index
    %246 = memref.load %arg3[%c0_106, %c5_107] : memref<3x8xf32, #tpu.memory_space<smem>>
    %247 = vector.broadcast %246 : f32 to vector<16x32xf32>
    %248 = arith.mulf %10, %247 : vector<16x32xf32>
    %c5_108 = arith.constant 5 : index
    %249 = memref.load %arg4[%c5_108] : memref<8xf32, #tpu.memory_space<smem>>
    %250 = vector.broadcast %249 : f32 to vector<16x32xf32>
    %251 = arith.addf %248, %250 : vector<16x32xf32>
    %c1_109 = arith.constant 1 : index
    %c5_110 = arith.constant 5 : index
    %252 = memref.load %arg3[%c1_109, %c5_110] : memref<3x8xf32, #tpu.memory_space<smem>>
    %253 = vector.broadcast %252 : f32 to vector<16x32xf32>
    %254 = arith.mulf %12, %253 : vector<16x32xf32>
    %255 = arith.addf %251, %254 : vector<16x32xf32>
    %c2_111 = arith.constant 2 : index
    %c5_112 = arith.constant 5 : index
    %256 = memref.load %arg3[%c2_111, %c5_112] : memref<3x8xf32, #tpu.memory_space<smem>>
    %257 = vector.broadcast %256 : f32 to vector<16x32xf32>
    %258 = arith.mulf %14, %257 : vector<16x32xf32>
    %259 = arith.addf %255, %258 : vector<16x32xf32>
    %260 = arith.subf %259, %133 : vector<16x32xf32>
    %261 = math.exp %260 : vector<16x32xf32>
    %262 = arith.addf %240, %261 : vector<16x32xf32>
    %c5_i32 = arith.constant 5 : i32
    %263 = vector.broadcast %c5_i32 : i32 to vector<16x32xi32>
    %264 = arith.cmpi eq, %5, %263 : vector<16x32xi32>
    %cst_113 = arith.constant 0.000000e+00 : f32
    %265 = vector.broadcast %cst_113 : f32 to vector<16x32xf32>
    %266 = arith.select %264, %259, %265 : vector<16x32xi1>, vector<16x32xf32>
    %267 = arith.addf %245, %266 : vector<16x32xf32>
    %c0_114 = arith.constant 0 : index
    %c6_115 = arith.constant 6 : index
    %268 = memref.load %arg3[%c0_114, %c6_115] : memref<3x8xf32, #tpu.memory_space<smem>>
    %269 = vector.broadcast %268 : f32 to vector<16x32xf32>
    %270 = arith.mulf %10, %269 : vector<16x32xf32>
    %c6_116 = arith.constant 6 : index
    %271 = memref.load %arg4[%c6_116] : memref<8xf32, #tpu.memory_space<smem>>
    %272 = vector.broadcast %271 : f32 to vector<16x32xf32>
    %273 = arith.addf %270, %272 : vector<16x32xf32>
    %c1_117 = arith.constant 1 : index
    %c6_118 = arith.constant 6 : index
    %274 = memref.load %arg3[%c1_117, %c6_118] : memref<3x8xf32, #tpu.memory_space<smem>>
    %275 = vector.broadcast %274 : f32 to vector<16x32xf32>
    %276 = arith.mulf %12, %275 : vector<16x32xf32>
    %277 = arith.addf %273, %276 : vector<16x32xf32>
    %c2_119 = arith.constant 2 : index
    %c6_120 = arith.constant 6 : index
    %278 = memref.load %arg3[%c2_119, %c6_120] : memref<3x8xf32, #tpu.memory_space<smem>>
    %279 = vector.broadcast %278 : f32 to vector<16x32xf32>
    %280 = arith.mulf %14, %279 : vector<16x32xf32>
    %281 = arith.addf %277, %280 : vector<16x32xf32>
    %282 = arith.subf %281, %133 : vector<16x32xf32>
    %283 = math.exp %282 : vector<16x32xf32>
    %284 = arith.addf %262, %283 : vector<16x32xf32>
    %c6_i32 = arith.constant 6 : i32
    %285 = vector.broadcast %c6_i32 : i32 to vector<16x32xi32>
    %286 = arith.cmpi eq, %5, %285 : vector<16x32xi32>
    %cst_121 = arith.constant 0.000000e+00 : f32
    %287 = vector.broadcast %cst_121 : f32 to vector<16x32xf32>
    %288 = arith.select %286, %281, %287 : vector<16x32xi1>, vector<16x32xf32>
    %289 = arith.addf %267, %288 : vector<16x32xf32>
    %c0_122 = arith.constant 0 : index
    %c7_123 = arith.constant 7 : index
    %290 = memref.load %arg3[%c0_122, %c7_123] : memref<3x8xf32, #tpu.memory_space<smem>>
    %291 = vector.broadcast %290 : f32 to vector<16x32xf32>
    %292 = arith.mulf %10, %291 : vector<16x32xf32>
    %c7_124 = arith.constant 7 : index
    %293 = memref.load %arg4[%c7_124] : memref<8xf32, #tpu.memory_space<smem>>
    %294 = vector.broadcast %293 : f32 to vector<16x32xf32>
    %295 = arith.addf %292, %294 : vector<16x32xf32>
    %c1_125 = arith.constant 1 : index
    %c7_126 = arith.constant 7 : index
    %296 = memref.load %arg3[%c1_125, %c7_126] : memref<3x8xf32, #tpu.memory_space<smem>>
    %297 = vector.broadcast %296 : f32 to vector<16x32xf32>
    %298 = arith.mulf %12, %297 : vector<16x32xf32>
    %299 = arith.addf %295, %298 : vector<16x32xf32>
    %c2_127 = arith.constant 2 : index
    %c7_128 = arith.constant 7 : index
    %300 = memref.load %arg3[%c2_127, %c7_128] : memref<3x8xf32, #tpu.memory_space<smem>>
    %301 = vector.broadcast %300 : f32 to vector<16x32xf32>
    %302 = arith.mulf %14, %301 : vector<16x32xf32>
    %303 = arith.addf %299, %302 : vector<16x32xf32>
    %304 = arith.subf %303, %133 : vector<16x32xf32>
    %305 = math.exp %304 : vector<16x32xf32>
    %306 = arith.addf %284, %305 : vector<16x32xf32>
    %c7_i32 = arith.constant 7 : i32
    %307 = vector.broadcast %c7_i32 : i32 to vector<16x32xi32>
    %308 = arith.cmpi eq, %5, %307 : vector<16x32xi32>
    %cst_129 = arith.constant 0.000000e+00 : f32
    %309 = vector.broadcast %cst_129 : f32 to vector<16x32xf32>
    %310 = arith.select %308, %303, %309 : vector<16x32xi1>, vector<16x32xf32>
    %311 = arith.addf %289, %310 : vector<16x32xf32>
    %312 = math.log %306 : vector<16x32xf32>
    %313 = arith.addf %133, %312 : vector<16x32xf32>
    %c0_i32_130 = arith.constant 0 : i32
    %314 = vector.broadcast %c0_i32_130 : i32 to vector<16x32xi32>
    %315 = arith.cmpi sge, %5, %314 : vector<16x32xi32>
    %316 = arith.extui %315 : vector<16x32xi1> to vector<16x32xi32>
    %317 = arith.sitofp %316 : vector<16x32xi32> to vector<16x32xf32>
    %318 = arith.subf %313, %311 : vector<16x32xf32>
    %319 = arith.mulf %318, %317 : vector<16x32xf32>
    %cst_131 = arith.constant dense<0.000000e+00> : vector<16xf32>
    %320 = vector.multi_reduction <add>, %319, %cst_131 [1] : vector<16x32xf32> to vector<16xf32>
    %321 = vector.shape_cast %320 : vector<16xf32> to vector<16x1xf32>
    %cst_132 = arith.constant dense<0.000000e+00> : vector<1xf32>
    %322 = vector.multi_reduction <add>, %321, %cst_132 [0] : vector<16x1xf32> to vector<1xf32>
    %323 = vector.shape_cast %322 : vector<1xf32> to vector<1x1xf32>
    %cst_133 = arith.constant dense<0.000000e+00> : vector<16xf32>
    %324 = vector.multi_reduction <add>, %317, %cst_133 [1] : vector<16x32xf32> to vector<16xf32>
    %325 = vector.shape_cast %324 : vector<16xf32> to vector<16x1xf32>
    %cst_134 = arith.constant dense<0.000000e+00> : vector<1xf32>
    %326 = vector.multi_reduction <add>, %325, %cst_134 [0] : vector<16x1xf32> to vector<1xf32>
    %327 = vector.shape_cast %326 : vector<1xf32> to vector<1x1xf32>
    %c0_135 = arith.constant 0 : index
    %c0_136 = arith.constant 0 : index
    %c0_137 = arith.constant 0 : index
    %c0_138 = arith.constant 0 : index
    %328 = vector.load %arg8[%c0_135, %c0_136, %c0_137, %c0_138] : memref<1x1x1x2xf32, #tpu.memory_space<vmem>>, vector<1x1x1x1xf32>
    %329 = vector.shape_cast %328 : vector<1x1x1x1xf32> to vector<1x1xf32>
    %330 = vector.shape_cast %323 : vector<1x1xf32> to vector<1x1x1x1xf32>
    tpu.vector_store %arg8[%c0_135, %c0_136, %c0_137, %c0_138], %330 {strides = array<i32>} : memref<1x1x1x2xf32, #tpu.memory_space<vmem>>, vector<1x1x1x1xf32>,
    %c0_139 = arith.constant 0 : index
    %c0_140 = arith.constant 0 : index
    %c0_141 = arith.constant 0 : index
    %c1_142 = arith.constant 1 : index
    %331 = vector.load %arg8[%c0_139, %c0_140, %c0_141, %c1_142] : memref<1x1x1x2xf32, #tpu.memory_space<vmem>>, vector<1x1x1x1xf32>
    %332 = vector.shape_cast %331 : vector<1x1x1x1xf32> to vector<1x1xf32>
    %333 = vector.shape_cast %327 : vector<1x1xf32> to vector<1x1x1x1xf32>
    tpu.vector_store %arg8[%c0_139, %c0_140, %c0_141, %c1_142], %333 {strides = array<i32>} : memref<1x1x1x2xf32, #tpu.memory_space<vmem>>, vector<1x1x1x1xf32>,
    return
  }
  func.func @transform_0(%arg0: i32, %arg1: i32) -> (i32, i32, i32, i32) {
    %c0_i32 = arith.constant 0 : i32
    %c0_i32_0 = arith.constant 0 : i32
    %c0_i32_1 = arith.constant 0 : i32
    return %arg0, %arg1, %c0_i32, %c0_i32_0 : i32, i32, i32, i32
  }
  func.func @transform_1(%arg0: i32, %arg1: i32) -> (i32, i32) {
    %c0_i32 = arith.constant 0 : i32
    %c0_i32_0 = arith.constant 0 : i32
    %c0_i32_1 = arith.constant 0 : i32
    return %c0_i32, %c0_i32_0 : i32, i32
  }
  func.func @transform_2(%arg0: i32, %arg1: i32) -> i32 {
    %c0_i32 = arith.constant 0 : i32
    %c0_i32_0 = arith.constant 0 : i32
    return %c0_i32 : i32
  }
  func.func @transform_3(%arg0: i32, %arg1: i32) -> (i32, i32) {
    %c0_i32 = arith.constant 0 : i32
    %c0_i32_0 = arith.constant 0 : i32
    %c0_i32_1 = arith.constant 0 : i32
    return %c0_i32, %c0_i32_0 : i32, i32
  }
  func.func @transform_4(%arg0: i32, %arg1: i32) -> (i32, i32, i32) {
    %c0_i32 = arith.constant 0 : i32
    %c0_i32_0 = arith.constant 0 : i32
    %c0_i32_1 = arith.constant 0 : i32
    return %arg1, %c0_i32, %c0_i32_0 : i32, i32, i32
  }
  func.func @transform_5(%arg0: i32, %arg1: i32) -> (i32, i32, i32, i32) {
    %c0_i32 = arith.constant 0 : i32
    %c0_i32_0 = arith.constant 0 : i32
    %c0_i32_1 = arith.constant 0 : i32
    return %arg0, %arg1, %c0_i32, %c0_i32_0 : i32, i32, i32, i32
  }
  func.func @transform_6(%arg0: i32, %arg1: i32) -> (i32, i32, i32, i32) {
    %c0_i32 = arith.constant 0 : i32
    %c0_i32_0 = arith.constant 0 : i32
    %c0_i32_1 = arith.constant 0 : i32
    return %arg0, %arg1, %c0_i32, %c0_i32_0 : i32, i32, i32, i32
  }
}

</mosaic_0001>

<llo_original>
// kernel: tpu_custom_call.1
$region0: #{tpu_custom_call.1}
  #allocation0 [shape = 'u32[]', space=smem, size = 0x4, offset = 0x4, fixed_abs, tag = 'smem constant byte address 0x4 - core index']
  #allocation1 [shape = 'u32[144,128]{1,0:T(1,128)}', space=vmem, size = 0x12000, scoped, tag = 'internal scratch']
  %s0 = inlined_call_operand.vmem [shape: f32[2,2,24,8], index: 0, kind: input, shape index: {}]
  %s1 = inlined_call_operand.vmem [shape: f32[3,8], index: 1, kind: input, shape index: {}]
  %s2 = inlined_call_operand.vmem [shape: f32[8], index: 2, kind: input, shape index: {}]
  %s3 = inlined_call_operand.vmem [shape: f32[8,32], index: 3, kind: input, shape index: {}]
  %s4 = inlined_call_operand.vmem [shape: f32[2,16,8], index: 4, kind: input, shape index: {}]
  %s5 = inlined_call_operand.vmem [shape: s8[2,2,16,32], index: 5, kind: input, shape index: {}]
  %s6 = inlined_call_operand.hbm [shape: f32[2,2,1,2], index: 6, kind: output, shape index: {}]
  %s7 = sld [smem:[#allocation0]]
  $region65: #{tpu_custom_call.1} parent=0
    _
  %s9 = ssub.s32 1, %s7
  %s10 = scalar_select 0, %s9, %s7
  $region1: #{tpu_custom_call.1} parent=0
    #allocation2 [shape = 'u8[2048]{0}', space=smem, size = 0x800, scoped, tag = 'input window, operand 1, single buffered']
    #allocation3 [shape = 's32[2]{0}', space=sflag, size = 0x8, scoped, tag = 'scoped memory for tpu_custom_call.1']
    #allocation4 [shape = 's32[2]{0}', space=sflag, size = 0x8, scoped, tag = 'scoped memory for tpu_custom_call.1']
    #allocation5 [shape = 'u8[512]{0}', space=smem, size = 0x200, scoped, tag = 'input window, operand 2, single buffered']
    #allocation6 [shape = 's32[1]{0}', space=sflag, size = 0x4, scoped, tag = 'scoped memory for tpu_custom_call.1']
    #allocation7 [shape = 'u8[1024]{0}', space=vmem, size = 0x400, scoped, tag = 'output window, operand 0']
    %11 = vsyncpa [#allocation4], 0
    %12 = vsyncpa [#allocation6], 0
    %13 = vsyncpa [#allocation3], 0
    %s14 = scalar_lea.sflag [#allocation3], 1
    %15 = vsyncpa %s14, 0
    loop: start=0, step=1, limit=6
    $region2: #{tpu_custom_call.1} parent=1 // loop_pre_header
      _
    $region3: #{tpu_custom_call.1} parent=1 // loop_header
      %s17 = sphi 0, %s21
      %p18 = scmp.ge.s32.totalorder %s17, 6
      %s24 = sphi 0, %s36
      %s25 = sphi 0, %s32
      %s26 = sphi 0, %s24
      %s27 = sphi 0, %s25
      %s28 = sphi 0, %s26
      %s29 = sphi 0, %s27
      %s41 = sphi 0, %s43
      %s44 = sphi 0, %s41
      %s45 = sphi 0, %s44
      %s61 = sphi 0, %s45
      %s65 = sphi 0, %s65
      %s67 = sphi 0, %s65
      %s68 = sphi 0, %s67
      %s82 = sphi 0, %s68
      %s86 = sphi 0, %s86
      %s88 = sphi 0, %s86
      %s89 = sphi 0, %s88
      %s103 = sphi 0, %s89
      %s107 = sphi 0, %s107
      %s109 = sphi 0, %s107
      %s110 = sphi 0, %s109
      %s124 = sphi 0, %s110
      %s130 = sphi 0, %s132
      %s133 = sphi 0, %s130
      %s134 = sphi 0, %s133
      %s150 = sphi 0, %s134
      %s158 = sphi 0, %s160
      %s161 = sphi 0, %s158
      %s162 = sphi 0, %s161
      %s178 = sphi 0, %s162
      %s186 = sphi 0, %s188
      %s189 = sphi 0, %s186
      %s190 = sphi 0, %s189
      %s206 = sphi 0, %s190
    $region4: #{tpu_custom_call.1} parent=1 // loop_header_branch
      %20 = sbr.rel (%p18) target = $region8
    $region5: #{tpu_custom_call.1} parent=1 // loop_body
      %s22 = ssub.s32 %s17, 1
      %s23 = ssub.s32 %s17, 2
      %s30 = sadd.s32 1, %s25
      %p31 = scmp.ge.s32.totalorder %s30, 2
      %s32 = scalar_select %p31, 0, %s30
      %s33 = sadd.s32 1, %s24
      %s34 = scalar_select %p31, %s33, %s24
      %p35 = scmp.ge.s32.totalorder %s34, 2
      %s36 = scalar_select %p35, 0, %s34
      %s37 = ssub.s32 %s24, %s36
      %s38 = ssub.s32 %s25, %s32
      %s39 = sor.u32 %s37, %s38
      %p40 = scmp.eq.s32.totalorder %s39, 0
      %s42 = sadd.s32 %s41, 1
      %s43 = scalar_select %p40, %s41, %s42
      %p46 = pneg %p40
      %p47 = scmp.eq.s32.totalorder %s17, 3
      %p48 = por %p46, %p47
      %p49 = scmp.ne.s32.totalorder %s41, %s44
      %p50 = scmp.eq.s32.totalorder %s17, 0
      %p51 = por %p49, %p50
      %p52 = scmp.ne.s32.totalorder %s41, %s44
      %p53 = scmp.eq.s32.totalorder %s22, 3
      %p54 = por %p52, %p53
      %p55 = scmp.ne.s32.totalorder %s44, %s45
      %p56 = scmp.eq.s32.totalorder %s22, 0
      %p57 = por %p55, %p56
      %p58 = scmp.ne.s32.totalorder %s44, %s45
      %p59 = scmp.eq.s32.totalorder %s23, 3
      %p60 = por %p58, %p59
      %p62 = scmp.ne.s32.totalorder %s45, %s61
      %p63 = scmp.eq.s32.totalorder %s23, 0
      %p64 = por %p62, %p63
      %s66 = sadd.s32 %s65, 1
      %p69 = scmp.eq.s32.totalorder %s17, 3
      %p70 = scmp.ne.s32.totalorder %s65, %s67
      %p71 = scmp.eq.s32.totalorder %s17, 0
      %p72 = por %p70, %p71
      %p73 = scmp.ne.s32.totalorder %s65, %s67
      %p74 = scmp.eq.s32.totalorder %s22, 3
      %p75 = por %p73, %p74
      %p76 = scmp.ne.s32.totalorder %s67, %s68
      %p77 = scmp.eq.s32.totalorder %s22, 0
      %p78 = por %p76, %p77
      %p79 = scmp.ne.s32.totalorder %s67, %s68
      %p80 = scmp.eq.s32.totalorder %s23, 3
      %p81 = por %p79, %p80
      %p83 = scmp.ne.s32.totalorder %s68, %s82
      %p84 = scmp.eq.s32.totalorder %s23, 0
      %p85 = por %p83, %p84
      %s87 = sadd.s32 %s86, 1
      %p90 = scmp.eq.s32.totalorder %s17, 3
      %p91 = scmp.ne.s32.totalorder %s86, %s88
      %p92 = scmp.eq.s32.totalorder %s17, 0
      %p93 = por %p91, %p92
      %p94 = scmp.ne.s32.totalorder %s86, %s88
      %p95 = scmp.eq.s32.totalorder %s22, 3
      %p96 = por %p94, %p95
      %p97 = scmp.ne.s32.totalorder %s88, %s89
      %p98 = scmp.eq.s32.totalorder %s22, 0
      %p99 = por %p97, %p98
      %p100 = scmp.ne.s32.totalorder %s88, %s89
      %p101 = scmp.eq.s32.totalorder %s23, 3
      %p102 = por %p100, %p101
      %p104 = scmp.ne.s32.totalorder %s89, %s103
      %p105 = scmp.eq.s32.totalorder %s23, 0
      %p106 = por %p104, %p105
      %s108 = sadd.s32 %s107, 1
      %p111 = scmp.eq.s32.totalorder %s17, 3
      %p112 = scmp.ne.s32.totalorder %s107, %s109
      %p113 = scmp.eq.s32.totalorder %s17, 0
      %p114 = por %p112, %p113
      %p115 = scmp.ne.s32.totalorder %s107, %s109
      %p116 = scmp.eq.s32.totalorder %s22, 3
      %p117 = por %p115, %p116
      %p118 = scmp.ne.s32.totalorder %s109, %s110
      %p119 = scmp.eq.s32.totalorder %s22, 0
      %p120 = por %p118, %p119
      %p121 = scmp.ne.s32.totalorder %s109, %s110
      %p122 = scmp.eq.s32.totalorder %s23, 3
      %p123 = por %p121, %p122
      %p125 = scmp.ne.s32.totalorder %s110, %s124
      %p126 = scmp.eq.s32.totalorder %s23, 0
      %p127 = por %p125, %p126
      %s128 = ssub.s32 %s25, %s32
      %p129 = scmp.eq.s32.totalorder %s128, 0
      %s131 = sadd.s32 %s130, 1
      %s132 = scalar_select %p129, %s130, %s131
      %p135 = pneg %p129
      %p136 = scmp.eq.s32.totalorder %s17, 3
      %p137 = por %p135, %p136
      %p138 = scmp.ne.s32.totalorder %s130, %s133
      %p139 = scmp.eq.s32.totalorder %s17, 0
      %p140 = por %p138, %p139
      %p141 = scmp.ne.s32.totalorder %s130, %s133
      %p142 = scmp.eq.s32.totalorder %s22, 3
      %p143 = por %p141, %p142
      %p144 = scmp.ne.s32.totalorder %s133, %s134
      %p145 = scmp.eq.s32.totalorder %s22, 0
      %p146 = por %p144, %p145
      %p147 = scmp.ne.s32.totalorder %s133, %s134
      %p148 = scmp.eq.s32.totalorder %s23, 3
      %p149 = por %p147, %p148
      %p151 = scmp.ne.s32.totalorder %s134, %s150
      %p152 = scmp.eq.s32.totalorder %s23, 0
      %p153 = por %p151, %p152
      %s154 = ssub.s32 %s24, %s36
      %s155 = ssub.s32 %s25, %s32
      %s156 = sor.u32 %s154, %s155
      %p157 = scmp.eq.s32.totalorder %s156, 0
      %s159 = sadd.s32 %s158, 1
      %s160 = scalar_select %p157, %s158, %s159
      %p163 = pneg %p157
      %p164 = scmp.eq.s32.totalorder %s17, 3
      %p165 = por %p163, %p164
      %p166 = scmp.ne.s32.totalorder %s158, %s161
      %p167 = scmp.eq.s32.totalorder %s17, 0
      %p168 = por %p166, %p167
      %p169 = scmp.ne.s32.totalorder %s158, %s161
      %p170 = scmp.eq.s32.totalorder %s22, 3
      %p171 = por %p169, %p170
      %p172 = scmp.ne.s32.totalorder %s161, %s162
      %p173 = scmp.eq.s32.totalorder %s22, 0
      %p174 = por %p172, %p173
      %p175 = scmp.ne.s32.totalorder %s161, %s162
      %p176 = scmp.eq.s32.totalorder %s23, 3
      %p177 = por %p175, %p176
      %p179 = scmp.ne.s32.totalorder %s162, %s178
      %p180 = scmp.eq.s32.totalorder %s23, 0
      %p181 = por %p179, %p180
      %s182 = ssub.s32 %s24, %s36
      %s183 = ssub.s32 %s25, %s32
      %s184 = sor.u32 %s182, %s183
      %p185 = scmp.eq.s32.totalorder %s184, 0
      %s187 = sadd.s32 %s186, 1
      %s188 = scalar_select %p185, %s186, %s187
      %p191 = pneg %p185
      %p192 = scmp.eq.s32.totalorder %s17, 3
      %p193 = por %p191, %p192
      %p194 = scmp.ne.s32.totalorder %s186, %s189
      %p195 = scmp.eq.s32.totalorder %s17, 0
      %p196 = por %p194, %p195
      %p197 = scmp.ne.s32.totalorder %s186, %s189
      %p198 = scmp.eq.s32.totalorder %s22, 3
      %p199 = por %p197, %p198
      %p200 = scmp.ne.s32.totalorder %s189, %s190
      %p201 = scmp.eq.s32.totalorder %s22, 0
      %p202 = por %p200, %p201
      %p203 = scmp.ne.s32.totalorder %s189, %s190
      %p204 = scmp.eq.s32.totalorder %s23, 3
      %p205 = por %p203, %p204
      %p207 = scmp.ne.s32.totalorder %s190, %s206
      %p208 = scmp.eq.s32.totalorder %s23, 0
      %p209 = por %p207, %p208
      %p210 = scmp.le.s32.totalorder 1, %s17
      %p211 = scmp.lt.s32.totalorder %s17, 5
      %p212 = pnand %p210, %p211
      %p213 = pneg %p212
      // Predicated region
      $region9: #{tpu_custom_call.1} parent=5 // pred_check
        _
      $region10: #{tpu_custom_call.1} parent=5 // pred_check_branch
        %215 = sbr.rel (%p212) target = $region12
      $region11: #{tpu_custom_call.1} parent=5 // pred_region
        %s216 = ssub.s32 %s17, 1
        // Predicated region
        $region13: #{tpu_custom_call.1} parent=11 // pred_check
          %p217 = pneg %p78
        $region14: #{tpu_custom_call.1} parent=11 // pred_check_branch
          %219 = sbr.rel (%p217) target = $region16
        $region15: #{tpu_custom_call.1} parent=11 // pred_region
          %s221 = ssub.s32 64, 64
          %222 = vsyncadd [#allocation4], %s221
          %s224 = sshll.u32 %s1, 4
          %s225 = int_to_ptr.vmem [resolvable:$true] %s224
          %227 = dma.vmem_to_smem %s225, 64, [#allocation2], [#allocation4]
        $region16: #{tpu_custom_call.1} parent=11 // pred_fallthru
          _
        // Predicated region
        $region17: #{tpu_custom_call.1} parent=11 // pred_check
          %p228 = pneg %p99
        $region18: #{tpu_custom_call.1} parent=11 // pred_check_branch
          %230 = sbr.rel (%p228) target = $region20
        $region19: #{tpu_custom_call.1} parent=11 // pred_region
          %s232 = ssub.s32 16, 16
          %233 = vsyncadd [#allocation6], %s232
          %s235 = sshll.u32 %s2, 4
          %s236 = int_to_ptr.vmem [resolvable:$true] %s235
          %238 = dma.vmem_to_smem %s236, 16, [#allocation5], [#allocation6]
        $region20: #{tpu_custom_call.1} parent=11 // pred_fallthru
          _
        // Predicated region
        $region21: #{tpu_custom_call.1} parent=11 // pred_check
          %p239 = pneg %p120
        $region22: #{tpu_custom_call.1} parent=11 // pred_check_branch
          %241 = sbr.rel (%p239) target = $region24
        $region23: #{tpu_custom_call.1} parent=11 // pred_region
          _
        $region24: #{tpu_custom_call.1} parent=11 // pred_fallthru
          _
      $region12: #{tpu_custom_call.1} parent=5 // pred_fallthru
        _
      %p242 = scmp.lt.s32.totalorder %s17, 4
      // Predicated region
      $region25: #{tpu_custom_call.1} parent=5 // pred_check
        %p243 = pneg %p242
      $region26: #{tpu_custom_call.1} parent=5 // pred_check_branch
        %245 = sbr.rel (%p243) target = $region28
      $region27: #{tpu_custom_call.1} parent=5 // pred_region
        // Predicated region
        $region29: #{tpu_custom_call.1} parent=27 // pred_check
          %p246 = pneg %p51
        $region30: #{tpu_custom_call.1} parent=27 // pred_check_branch
          %248 = sbr.rel (%p246) target = $region32
        $region31: #{tpu_custom_call.1} parent=27 // pred_region
          %p249 = scmp.lt.s32.totalorder %s24, 1
          %s250 = scalar_select %p249, %s24, 1
          %p251 = scmp.lt.s32.totalorder %s25, 1
          %s252 = scalar_select %p251, %s25, 1
          %s253 = smul.addr %s252, 3
          %s254 = smul.addr %s250, 6
          %s255 = sadd.s32 %s253, %s254
          %s256 = smul.addr %s255, 8
          %s257 = scalar_lea.vmem %s0, %s256
        $region32: #{tpu_custom_call.1} parent=27 // pred_fallthru
          _
        // Predicated region
        $region33: #{tpu_custom_call.1} parent=27 // pred_check
          %p258 = pneg %p140
        $region34: #{tpu_custom_call.1} parent=27 // pred_check_branch
          %260 = sbr.rel (%p258) target = $region36
        $region35: #{tpu_custom_call.1} parent=27 // pred_region
          %p261 = scmp.lt.s32.totalorder %s25, 1
          %s262 = scalar_select %p261, %s25, 1
          %s263 = smul.addr %s262, 2
          %s264 = smul.addr %s263, 8
          %s265 = scalar_lea.vmem %s4, %s264
        $region36: #{tpu_custom_call.1} parent=27 // pred_fallthru
          _
        // Predicated region
        $region37: #{tpu_custom_call.1} parent=27 // pred_check
          %p266 = pneg %p168
        $region38: #{tpu_custom_call.1} parent=27 // pred_check_branch
          %268 = sbr.rel (%p266) target = $region40
        $region39: #{tpu_custom_call.1} parent=27 // pred_region
          %p269 = scmp.lt.s32.totalorder %s24, 1
          %s270 = scalar_select %p269, %s24, 1
          %p271 = scmp.lt.s32.totalorder %s25, 1
          %s272 = scalar_select %p271, %s25, 1
          %s273 = smul.addr %s272, 2
          %s274 = smul.addr %s270, 4
          %s275 = sadd.s32 %s273, %s274
          %s276 = smul.addr %s275, 2
          %s277 = scalar_lea.vmem %s5, %s276
        $region40: #{tpu_custom_call.1} parent=27 // pred_fallthru
          _
      $region28: #{tpu_custom_call.1} parent=5 // pred_fallthru
        _
      %p278 = scmp.le.s32.totalorder 1, %s17
      %p279 = scmp.lt.s32.totalorder %s17, 5
      %p280 = pnand %p278, %p279
      %p281 = pneg %p280
      // Predicated region
      $region41: #{tpu_custom_call.1} parent=5 // pred_check
        _
      $region42: #{tpu_custom_call.1} parent=5 // pred_check_branch
        %283 = sbr.rel (%p280) target = $region44
      $region43: #{tpu_custom_call.1} parent=5 // pred_region
        %s284 = ssub.s32 %s17, 1
        // Predicated region
        $region45: #{tpu_custom_call.1} parent=43 // pred_check
          %p285 = pneg %p78
        $region46: #{tpu_custom_call.1} parent=43 // pred_check_branch
          %287 = sbr.rel (%p285) target = $region48
        $region47: #{tpu_custom_call.1} parent=43 // pred_region
          %288 = dma.done [#allocation4], 64
        $region48: #{tpu_custom_call.1} parent=43 // pred_fallthru
          _
        // Predicated region
        $region49: #{tpu_custom_call.1} parent=43 // pred_check
          %p289 = pneg %p99
        $region50: #{tpu_custom_call.1} parent=43 // pred_check_branch
          %291 = sbr.rel (%p289) target = $region52
        $region51: #{tpu_custom_call.1} parent=43 // pred_region
          %292 = dma.done [#allocation6], 16
        $region52: #{tpu_custom_call.1} parent=43 // pred_fallthru
          _
        %293 = sfence
        %p294 = scmp.lt.s32.totalorder %s26, 1
        %s295 = scalar_select %p294, %s26, 1
        %p296 = scmp.lt.s32.totalorder %s27, 1
        %s297 = scalar_select %p296, %s27, 1
        %s298 = smul.addr %s297, 3
        %s299 = smul.addr %s295, 6
        %s300 = sadd.s32 %s298, %s299
        %s301 = smul.addr %s300, 8
        %s302 = scalar_lea.vmem %s0, %s301
        %p303 = pneg %p57
        %p304 = pneg %p54
        %p305 = pneg %p78
        %p306 = pneg %p75
        %p307 = pneg %p99
        %p308 = pneg %p96
        %p309 = pneg %p120
        %p310 = pneg %p117
        %p311 = scmp.lt.s32.totalorder %s27, 1
        %s312 = scalar_select %p311, %s27, 1
        %s313 = smul.addr %s312, 2
        %s314 = smul.addr %s313, 8
        %s315 = scalar_lea.vmem %s4, %s314
        %p316 = pneg %p146
        %p317 = pneg %p143
        %p318 = scmp.lt.s32.totalorder %s26, 1
        %s319 = scalar_select %p318, %s26, 1
        %p320 = scmp.lt.s32.totalorder %s27, 1
        %s321 = scalar_select %p320, %s27, 1
        %s322 = smul.addr %s321, 2
        %s323 = smul.addr %s319, 4
        %s324 = sadd.s32 %s322, %s323
        %s325 = smul.addr %s324, 2
        %s326 = scalar_lea.vmem %s5, %s325
        %p327 = pneg %p174
        %p328 = pneg %p171
        %p329 = pneg %p202
        %p330 = pneg %p199
        %s331 = sand.u32 %s189, 1
        %s332 = scalar_lea.sflag [#allocation3], %s331
        %s333 = sand.u32 %s189, 1
        %s334 = scalar_lea.vmem [#allocation7], %s333
        %p335 = scmp.lt.s32.totalorder %s26, 1
        %s336 = scalar_select %p335, %s26, 1
        %p337 = scmp.lt.s32.totalorder %s27, 1
        %s338 = scalar_select %p337, %s27, 1
        %s339 = smul.addr %s338, 3
        %s340 = smul.addr %s336, 6
        %s341 = sadd.s32 %s339, %s340
        %s342 = smul.addr %s341, 8
        %s343 = scalar_lea.vmem %s0, %s342
        %p344 = scmp.lt.s32.totalorder %s27, 1
        %s345 = scalar_select %p344, %s27, 1
        %s346 = smul.addr %s345, 2
        %s347 = smul.addr %s346, 8
        %s348 = scalar_lea.vmem %s4, %s347
        %p349 = scmp.lt.s32.totalorder %s26, 1
        %s350 = scalar_select %p349, %s26, 1
        %p351 = scmp.lt.s32.totalorder %s27, 1
        %s352 = scalar_select %p351, %s27, 1
        %s353 = smul.addr %s352, 2
        %s354 = smul.addr %s350, 4
        %s355 = sadd.s32 %s353, %s354
        %s356 = smul.addr %s355, 2
        %s357 = scalar_lea.vmem %s5, %s356
        %v358 = vld [vmem:[%s3] sm:$0xff]
        %v359 = vld [vmem:[%s348] sm:$0xff]
        %v360 = vld [vmem:[%s348 + $0x8] sm:$0xff]
        %v361 = vld [vmem:[%s357] sm:$0x3]
        %v362 = vld [vmem:[%s357 + $0x2] sm:$0x3]
        %v363 = vunpack.c.0.s8 %v361
        %v364 = vunpack.c.0.s8 %v362
        %v365 = vld [vmem:[%s343] sm:$0xff]
        %v366 = vld [vmem:[%s343 + $0x8] sm:$0xff]
        %v367 = vld [vmem:[%s343 + $0x10] sm:$0xff]
        %vm368 = vcmask 64512
        %v370 = vsel %vm368, %v365, 0
        %v373 = vsel %vm368, %v366, 0
        %v376 = vsel %vm368, %v367, 0
        %378 = vmatprep.subr.mxu0 0.0
        %379 = vmatpush1.msra.mxu0 %v358
        %380 = vmatprep.subr.mxu0 0.0
        %381 = vmatpush1.msra.mxu0 0.0
        %382 = vmatprep.subr.mxu0 0.0
        %383 = vmatpush1.msra.mxu0 0.0
        %384 = vmatprep.subr.mxu0 0.0
        %385 = vmatpush1.msra.mxu0 0.0
        %386 = vmatprep.subr.mxu0 0.0
        %387 = vmatpush1.msra.mxu0 0.0
        %388 = vmatprep.subr.mxu0 0.0
        %389 = vmatpush1.msra.mxu0 0.0
        %390 = vmatprep.subr.mxu0 0.0
        %391 = vmatpush1.msra.mxu0 0.0
        %392 = vmatprep.subr.mxu0 0.0
        %393 = vmatpush1.msra.mxu0 0.0
        %394 = vmatprep.subr.mxu0 0.0
        %395 = vmatpush1.msra.mxu0 0.0
        %396 = vmatprep.subr.mxu0 0.0
        %397 = vmatpush1.msra.mxu0 0.0
        %398 = vmatprep.subr.mxu0 0.0
        %399 = vmatpush1.msra.mxu0 0.0
        %400 = vmatprep.subr.mxu0 0.0
        %401 = vmatpush1.msra.mxu0 0.0
        %402 = vmatprep.subr.mxu0 0.0
        %403 = vmatpush1.msra.mxu0 0.0
        %404 = vmatprep.subr.mxu0 0.0
        %405 = vmatpush1.msra.mxu0 0.0
        %406 = vmatprep.subr.mxu0 0.0
        %407 = vmatpush1.msra.mxu0 0.0
        %408 = vmatprep.subr.mxu0 0.0
        %409 = vmatpush1.msra.mxu0 0.0
        %410 = vmatprep.subr.mxu0 0.0
        %411 = vmatpush1.msra.mxu0 0.0
        %412 = vmatprep.subr.mxu0 0.0
        %413 = vmatpush1.msra.mxu0 0.0
        %414 = vmatprep.subr.mxu0 0.0
        %415 = vmatpush1.msra.mxu0 0.0
        %416 = vmatprep.subr.mxu0 0.0
        %417 = vmatpush1.msra.mxu0 0.0
        %418 = vmatprep.subr.mxu0 0.0
        %419 = vmatpush1.msra.mxu0 0.0
        %420 = vmatprep.subr.mxu0 0.0
        %421 = vmatpush1.msra.mxu0 0.0
        %422 = vmatprep.subr.mxu0 0.0
        %423 = vmatpush1.msra.mxu0 0.0
        %424 = vmatprep.subr.mxu0 0.0
        %425 = vmatpush1.msra.mxu0 0.0
        %426 = vmatprep.subr.mxu0 0.0
        %427 = vmatpush1.msra.mxu0 0.0
        %428 = vmatprep.subr.mxu0 0.0
        %429 = vmatpush1.msra.mxu0 0.0
        %430 = vmatprep.subr.mxu0 0.0
        %431 = vmatpush1.msra.mxu0 0.0
        %432 = vmatprep.subr.mxu0 0.0
        %433 = vmatpush1.msra.mxu0 0.0
        %434 = vmatprep.subr.mxu0 0.0
        %435 = vmatpush1.msra.mxu0 0.0
        %436 = vmatprep.subr.mxu0 0.0
        %437 = vmatpush1.msra.mxu0 0.0
        %438 = vmatprep.subr.mxu0 0.0
        %439 = vmatpush1.msra.mxu0 0.0
        %440 = vmatprep.subr.mxu0 0.0
        %441 = vmatpush1.msra.mxu0 0.0
        %442 = vmatprep.mubr.f32.mxu0 0.0
        %443 = vmatmul.mubr.f32.gmra.mrb[0].mxu0 %v370
        %v444 = vpop.f32.mrb[0].mxu0
        %v445 = vadd.f32 0.0, %v444
        %v446 = vpop.f32.mrb[0].mxu0
        %447 = vmatprep.mubr.f32.mxu0 0.0
        %448 = vmatmul.mubr.f32.gmra.mrb[0].mxu0 %v373
        %v449 = vpop.f32.mrb[0].mxu0
        %v450 = vadd.f32 0.0, %v449
        %v451 = vpop.f32.mrb[0].mxu0
        %452 = vmatprep.mubr.f32.mxu0 0.0
        %453 = vmatmul.mubr.f32.gmra.mrb[0].mxu0 %v376
        %v454 = vpop.f32.mrb[0].mxu0
        %v455 = vadd.f32 0.0, %v454
        %v456 = vpop.f32.mrb[0].mxu0
        %457 = vdwg.mxu0
        %v459 = vsel %vm368, %v359, 0
        %v462 = vsel %vm368, %v360, 0
        %464 = vmatprep.subr.mxu0 0.0
        %465 = vmatpush1.msra.mxu0 %v445
        %466 = vmatprep.subr.mxu0 0.0
        %467 = vmatpush1.msra.mxu0 0.0
        %468 = vmatprep.subr.mxu0 0.0
        %469 = vmatpush1.msra.mxu0 0.0
        %470 = vmatprep.subr.mxu0 0.0
        %471 = vmatpush1.msra.mxu0 0.0
        %472 = vmatprep.subr.mxu0 0.0
        %473 = vmatpush1.msra.mxu0 0.0
        %474 = vmatprep.subr.mxu0 0.0
        %475 = vmatpush1.msra.mxu0 0.0
        %476 = vmatprep.subr.mxu0 0.0
        %477 = vmatpush1.msra.mxu0 0.0
        %478 = vmatprep.subr.mxu0 0.0
        %479 = vmatpush1.msra.mxu0 0.0
        %480 = vmatprep.subr.mxu0 0.0
        %481 = vmatpush1.msra.mxu0 0.0
        %482 = vmatprep.subr.mxu0 0.0
        %483 = vmatpush1.msra.mxu0 0.0
        %484 = vmatprep.subr.mxu0 0.0
        %485 = vmatpush1.msra.mxu0 0.0
        %486 = vmatprep.subr.mxu0 0.0
        %487 = vmatpush1.msra.mxu0 0.0
        %488 = vmatprep.subr.mxu0 0.0
        %489 = vmatpush1.msra.mxu0 0.0
        %490 = vmatprep.subr.mxu0 0.0
        %491 = vmatpush1.msra.mxu0 0.0
        %492 = vmatprep.subr.mxu0 0.0
        %493 = vmatpush1.msra.mxu0 0.0
        %494 = vmatprep.subr.mxu0 0.0
        %495 = vmatpush1.msra.mxu0 0.0
        %496 = vmatprep.subr.mxu0 0.0
        %497 = vmatpush1.msra.mxu0 0.0
        %498 = vmatprep.subr.mxu0 0.0
        %499 = vmatpush1.msra.mxu0 0.0
        %500 = vmatprep.subr.mxu0 0.0
        %501 = vmatpush1.msra.mxu0 0.0
        %502 = vmatprep.subr.mxu0 0.0
        %503 = vmatpush1.msra.mxu0 0.0
        %504 = vmatprep.subr.mxu0 0.0
        %505 = vmatpush1.msra.mxu0 0.0
        %506 = vmatprep.subr.mxu0 0.0
        %507 = vmatpush1.msra.mxu0 0.0
        %508 = vmatprep.subr.mxu0 0.0
        %509 = vmatpush1.msra.mxu0 0.0
        %510 = vmatprep.subr.mxu0 0.0
        %511 = vmatpush1.msra.mxu0 0.0
        %512 = vmatprep.subr.mxu0 0.0
        %513 = vmatpush1.msra.mxu0 0.0
        %514 = vmatprep.subr.mxu0 0.0
        %515 = vmatpush1.msra.mxu0 0.0
        %516 = vmatprep.subr.mxu0 0.0
        %517 = vmatpush1.msra.mxu0 0.0
        %518 = vmatprep.subr.mxu0 0.0
        %519 = vmatpush1.msra.mxu0 0.0
        %520 = vmatprep.subr.mxu0 0.0
        %521 = vmatpush1.msra.mxu0 0.0
        %522 = vmatprep.subr.mxu0 0.0
        %523 = vmatpush1.msra.mxu0 0.0
        %524 = vmatprep.subr.mxu0 0.0
        %525 = vmatpush1.msra.mxu0 0.0
        %526 = vmatprep.subr.mxu0 0.0
        %527 = vmatpush1.msra.mxu0 0.0
        %528 = vmatprep.mubr.f32.mxu0 0.0
        %529 = vmatmul.mubr.f32.gmra.mrb[0].mxu0 %v459
        %v530 = vpop.f32.mrb[0].mxu0
        %v531 = vadd.f32 0.0, %v530
        %v532 = vpop.f32.mrb[0].mxu0
        %533 = vmatprep.mubr.f32.mxu0 0.0
        %534 = vmatmul.mubr.f32.gmra.mrb[0].mxu0 %v462
        %v535 = vpop.f32.mrb[0].mxu0
        %v536 = vadd.f32 0.0, %v535
        %v537 = vpop.f32.mrb[0].mxu0
        %538 = vdwg.mxu0
        %539 = vmatprep.subr.mxu0 0.0
        %540 = vmatpush1.msra.mxu0 %v450
        %541 = vmatprep.subr.mxu0 0.0
        %542 = vmatpush1.msra.mxu0 0.0
        %543 = vmatprep.subr.mxu0 0.0
        %544 = vmatpush1.msra.mxu0 0.0
        %545 = vmatprep.subr.mxu0 0.0
        %546 = vmatpush1.msra.mxu0 0.0
        %547 = vmatprep.subr.mxu0 0.0
        %548 = vmatpush1.msra.mxu0 0.0
        %549 = vmatprep.subr.mxu0 0.0
        %550 = vmatpush1.msra.mxu0 0.0
        %551 = vmatprep.subr.mxu0 0.0
        %552 = vmatpush1.msra.mxu0 0.0
        %553 = vmatprep.subr.mxu0 0.0
        %554 = vmatpush1.msra.mxu0 0.0
        %555 = vmatprep.subr.mxu0 0.0
        %556 = vmatpush1.msra.mxu0 0.0
        %557 = vmatprep.subr.mxu0 0.0
        %558 = vmatpush1.msra.mxu0 0.0
        %559 = vmatprep.subr.mxu0 0.0
        %560 = vmatpush1.msra.mxu0 0.0
        %561 = vmatprep.subr.mxu0 0.0
        %562 = vmatpush1.msra.mxu0 0.0
        %563 = vmatprep.subr.mxu0 0.0
        %564 = vmatpush1.msra.mxu0 0.0
        %565 = vmatprep.subr.mxu0 0.0
        %566 = vmatpush1.msra.mxu0 0.0
        %567 = vmatprep.subr.mxu0 0.0
        %568 = vmatpush1.msra.mxu0 0.0
        %569 = vmatprep.subr.mxu0 0.0
        %570 = vmatpush1.msra.mxu0 0.0
        %571 = vmatprep.subr.mxu0 0.0
        %572 = vmatpush1.msra.mxu0 0.0
        %573 = vmatprep.subr.mxu0 0.0
        %574 = vmatpush1.msra.mxu0 0.0
        %575 = vmatprep.subr.mxu0 0.0
        %576 = vmatpush1.msra.mxu0 0.0
        %577 = vmatprep.subr.mxu0 0.0
        %578 = vmatpush1.msra.mxu0 0.0
        %579 = vmatprep.subr.mxu0 0.0
        %580 = vmatpush1.msra.mxu0 0.0
        %581 = vmatprep.subr.mxu0 0.0
        %582 = vmatpush1.msra.mxu0 0.0
        %583 = vmatprep.subr.mxu0 0.0
        %584 = vmatpush1.msra.mxu0 0.0
        %585 = vmatprep.subr.mxu0 0.0
        %586 = vmatpush1.msra.mxu0 0.0
        %587 = vmatprep.subr.mxu0 0.0
        %588 = vmatpush1.msra.mxu0 0.0
        %589 = vmatprep.subr.mxu0 0.0
        %590 = vmatpush1.msra.mxu0 0.0
        %591 = vmatprep.subr.mxu0 0.0
        %592 = vmatpush1.msra.mxu0 0.0
        %593 = vmatprep.subr.mxu0 0.0
        %594 = vmatpush1.msra.mxu0 0.0
        %595 = vmatprep.subr.mxu0 0.0
        %596 = vmatpush1.msra.mxu0 0.0
        %597 = vmatprep.subr.mxu0 0.0
        %598 = vmatpush1.msra.mxu0 0.0
        %599 = vmatprep.subr.mxu0 0.0
        %600 = vmatpush1.msra.mxu0 0.0
        %601 = vmatprep.subr.mxu0 0.0
        %602 = vmatpush1.msra.mxu0 0.0
        %603 = vmatprep.mubr.f32.mxu0 0.0
        %604 = vmatmul.mubr.f32.gmra.mrb[0].mxu0 %v459
        %v605 = vpop.f32.mrb[0].mxu0
        %v606 = vadd.f32 0.0, %v605
        %v607 = vpop.f32.mrb[0].mxu0
        %608 = vmatprep.mubr.f32.mxu0 0.0
        %609 = vmatmul.mubr.f32.gmra.mrb[0].mxu0 %v462
        %v610 = vpop.f32.mrb[0].mxu0
        %v611 = vadd.f32 0.0, %v610
        %v612 = vpop.f32.mrb[0].mxu0
        %613 = vdwg.mxu0
        %614 = vmatprep.subr.mxu0 0.0
        %615 = vmatpush1.msra.mxu0 %v455
        %616 = vmatprep.subr.mxu0 0.0
        %617 = vmatpush1.msra.mxu0 0.0
        %618 = vmatprep.subr.mxu0 0.0
        %619 = vmatpush1.msra.mxu0 0.0
        %620 = vmatprep.subr.mxu0 0.0
        %621 = vmatpush1.msra.mxu0 0.0
        %622 = vmatprep.subr.mxu0 0.0
        %623 = vmatpush1.msra.mxu0 0.0
        %624 = vmatprep.subr.mxu0 0.0
        %625 = vmatpush1.msra.mxu0 0.0
        %626 = vmatprep.subr.mxu0 0.0
        %627 = vmatpush1.msra.mxu0 0.0
        %628 = vmatprep.subr.mxu0 0.0
        %629 = vmatpush1.msra.mxu0 0.0
        %630 = vmatprep.subr.mxu0 0.0
        %631 = vmatpush1.msra.mxu0 0.0
        %632 = vmatprep.subr.mxu0 0.0
        %633 = vmatpush1.msra.mxu0 0.0
        %634 = vmatprep.subr.mxu0 0.0
        %635 = vmatpush1.msra.mxu0 0.0
        %636 = vmatprep.subr.mxu0 0.0
        %637 = vmatpush1.msra.mxu0 0.0
        %638 = vmatprep.subr.mxu0 0.0
        %639 = vmatpush1.msra.mxu0 0.0
        %640 = vmatprep.subr.mxu0 0.0
        %641 = vmatpush1.msra.mxu0 0.0
        %642 = vmatprep.subr.mxu0 0.0
        %643 = vmatpush1.msra.mxu0 0.0
        %644 = vmatprep.subr.mxu0 0.0
        %645 = vmatpush1.msra.mxu0 0.0
        %646 = vmatprep.subr.mxu0 0.0
        %647 = vmatpush1.msra.mxu0 0.0
        %648 = vmatprep.subr.mxu0 0.0
        %649 = vmatpush1.msra.mxu0 0.0
        %650 = vmatprep.subr.mxu0 0.0
        %651 = vmatpush1.msra.mxu0 0.0
        %652 = vmatprep.subr.mxu0 0.0
        %653 = vmatpush1.msra.mxu0 0.0
        %654 = vmatprep.subr.mxu0 0.0
        %655 = vmatpush1.msra.mxu0 0.0
        %656 = vmatprep.subr.mxu0 0.0
        %657 = vmatpush1.msra.mxu0 0.0
        %658 = vmatprep.subr.mxu0 0.0
        %659 = vmatpush1.msra.mxu0 0.0
        %660 = vmatprep.subr.mxu0 0.0
        %661 = vmatpush1.msra.mxu0 0.0
        %662 = vmatprep.subr.mxu0 0.0
        %663 = vmatpush1.msra.mxu0 0.0
        %664 = vmatprep.subr.mxu0 0.0
        %665 = vmatpush1.msra.mxu0 0.0
        %666 = vmatprep.subr.mxu0 0.0
        %667 = vmatpush1.msra.mxu0 0.0
        %668 = vmatprep.subr.mxu0 0.0
        %669 = vmatpush1.msra.mxu0 0.0
        %670 = vmatprep.subr.mxu0 0.0
        %671 = vmatpush1.msra.mxu0 0.0
        %672 = vmatprep.subr.mxu0 0.0
        %673 = vmatpush1.msra.mxu0 0.0
        %674 = vmatprep.subr.mxu0 0.0
        %675 = vmatpush1.msra.mxu0 0.0
        %676 = vmatprep.subr.mxu0 0.0
        %677 = vmatpush1.msra.mxu0 0.0
        %678 = vmatprep.mubr.f32.mxu0 0.0
        %679 = vmatmul.mubr.f32.gmra.mrb[0].mxu0 %v459
        %v680 = vpop.f32.mrb[0].mxu0
        %v681 = vadd.f32 0.0, %v680
        %v682 = vpop.f32.mrb[0].mxu0
        %683 = vmatprep.mubr.f32.mxu0 0.0
        %684 = vmatmul.mubr.f32.gmra.mrb[0].mxu0 %v462
        %v685 = vpop.f32.mrb[0].mxu0
        %v686 = vadd.f32 0.0, %v685
        %v687 = vpop.f32.mrb[0].mxu0
        %688 = vdwg.mxu0
        %s689 = sld [smem:[#allocation2]]
        %v690 = vstv %s689
        %v691 = vmul.f32 %v531, %v690
        %v692 = vmul.f32 %v536, %v690
        %s693 = sld [smem:[#allocation5]]
        %v694 = vstv %s693
        %v695 = vadd.f32 %v691, %v694
        %v696 = vadd.f32 %v692, %v694
        %s697 = sld [smem:[#allocation2 + $0x80]]
        %v698 = vstv %s697
        %v699 = vmul.f32 %v606, %v698
        %v700 = vmul.f32 %v611, %v698
        %v701 = vadd.f32 %v695, %v699
        %v702 = vadd.f32 %v696, %v700
        %s703 = sld [smem:[#allocation2 + $0x100]]
        %v704 = vstv %s703
        %v705 = vmul.f32 %v681, %v704
        %v706 = vmul.f32 %v686, %v704
        %v707 = vadd.f32 %v701, %v705
        %v708 = vadd.f32 %v702, %v706
        %s709 = sld [smem:[#allocation2 + $0x1]]
        %v710 = vstv %s709
        %v711 = vmul.f32 %v531, %v710
        %v712 = vmul.f32 %v536, %v710
        %s713 = sld [smem:[#allocation5 + $0x1]]
        %v714 = vstv %s713
        %v715 = vadd.f32 %v711, %v714
        %v716 = vadd.f32 %v712, %v714
        %s717 = sld [smem:[#allocation2 + $0x81]]
        %v718 = vstv %s717
        %v719 = vmul.f32 %v606, %v718
        %v720 = vmul.f32 %v611, %v718
        %v721 = vadd.f32 %v715, %v719
        %v722 = vadd.f32 %v716, %v720
        %s723 = sld [smem:[#allocation2 + $0x101]]
        %v724 = vstv %s723
        %v725 = vmul.f32 %v681, %v724
        %v726 = vmul.f32 %v686, %v724
        %v727 = vadd.f32 %v721, %v725
        %v728 = vadd.f32 %v722, %v726
        %v729 = vmax.f32 %v707, %v727
        %v730 = vmax.f32 %v708, %v728
        %s731 = sld [smem:[#allocation2 + $0x2]]
        %v732 = vstv %s731
        %v733 = vmul.f32 %v531, %v732
        %v734 = vmul.f32 %v536, %v732
        %s735 = sld [smem:[#allocation5 + $0x2]]
        %v736 = vstv %s735
        %v737 = vadd.f32 %v733, %v736
        %v738 = vadd.f32 %v734, %v736
        %s739 = sld [smem:[#allocation2 + $0x82]]
        %v740 = vstv %s739
        %v741 = vmul.f32 %v606, %v740
        %v742 = vmul.f32 %v611, %v740
        %v743 = vadd.f32 %v737, %v741
        %v744 = vadd.f32 %v738, %v742
        %s745 = sld [smem:[#allocation2 + $0x102]]
        %v746 = vstv %s745
        %v747 = vmul.f32 %v681, %v746
        %v748 = vmul.f32 %v686, %v746
        %v749 = vadd.f32 %v743, %v747
        %v750 = vadd.f32 %v744, %v748
        %v751 = vmax.f32 %v729, %v749
        %v752 = vmax.f32 %v730, %v750
        %s753 = sld [smem:[#allocation2 + $0x3]]
        %v754 = vstv %s753
        %v755 = vmul.f32 %v531, %v754
        %v756 = vmul.f32 %v536, %v754
        %s757 = sld [smem:[#allocation5 + $0x3]]
        %v758 = vstv %s757
        %v759 = vadd.f32 %v755, %v758
        %v760 = vadd.f32 %v756, %v758
        %s761 = sld [smem:[#allocation2 + $0x83]]
        %v762 = vstv %s761
        %v763 = vmul.f32 %v606, %v762
        %v764 = vmul.f32 %v611, %v762
        %v765 = vadd.f32 %v759, %v763
        %v766 = vadd.f32 %v760, %v764
        %s767 = sld [smem:[#allocation2 + $0x103]]
        %v768 = vstv %s767
        %v769 = vmul.f32 %v681, %v768
        %v770 = vmul.f32 %v686, %v768
        %v771 = vadd.f32 %v765, %v769
        %v772 = vadd.f32 %v766, %v770
        %v773 = vmax.f32 %v751, %v771
        %v774 = vmax.f32 %v752, %v772
        %s775 = sld [smem:[#allocation2 + $0x4]]
        %v776 = vstv %s775
        %v777 = vmul.f32 %v531, %v776
        %v778 = vmul.f32 %v536, %v776
        %s779 = sld [smem:[#allocation5 + $0x4]]
        %v780 = vstv %s779
        %v781 = vadd.f32 %v777, %v780
        %v782 = vadd.f32 %v778, %v780
        %s783 = sld [smem:[#allocation2 + $0x84]]
        %v784 = vstv %s783
        %v785 = vmul.f32 %v606, %v784
        %v786 = vmul.f32 %v611, %v784
        %v787 = vadd.f32 %v781, %v785
        %v788 = vadd.f32 %v782, %v786
        %s789 = sld [smem:[#allocation2 + $0x104]]
        %v790 = vstv %s789
        %v791 = vmul.f32 %v681, %v790
        %v792 = vmul.f32 %v686, %v790
        %v793 = vadd.f32 %v787, %v791
        %v794 = vadd.f32 %v788, %v792
        %v795 = vmax.f32 %v773, %v793
        %v796 = vmax.f32 %v774, %v794
        %s797 = sld [smem:[#allocation2 + $0x5]]
        %v798 = vstv %s797
        %v799 = vmul.f32 %v531, %v798
        %v800 = vmul.f32 %v536, %v798
        %s801 = sld [smem:[#allocation5 + $0x5]]
        %v802 = vstv %s801
        %v803 = vadd.f32 %v799, %v802
        %v804 = vadd.f32 %v800, %v802
        %s805 = sld [smem:[#allocation2 + $0x85]]
        %v806 = vstv %s805
        %v807 = vmul.f32 %v606, %v806
        %v808 = vmul.f32 %v611, %v806
        %v809 = vadd.f32 %v803, %v807
        %v810 = vadd.f32 %v804, %v808
        %s811 = sld [smem:[#allocation2 + $0x105]]
        %v812 = vstv %s811
        %v813 = vmul.f32 %v681, %v812
        %v814 = vmul.f32 %v686, %v812
        %v815 = vadd.f32 %v809, %v813
        %v816 = vadd.f32 %v810, %v814
        %v817 = vmax.f32 %v795, %v815
        %v818 = vmax.f32 %v796, %v816
        %s819 = sld [smem:[#allocation2 + $0x6]]
        %v820 = vstv %s819
        %v821 = vmul.f32 %v531, %v820
        %v822 = vmul.f32 %v536, %v820
        %s823 = sld [smem:[#allocation5 + $0x6]]
        %v824 = vstv %s823
        %v825 = vadd.f32 %v821, %v824
        %v826 = vadd.f32 %v822, %v824
        %s827 = sld [smem:[#allocation2 + $0x86]]
        %v828 = vstv %s827
        %v829 = vmul.f32 %v606, %v828
        %v830 = vmul.f32 %v611, %v828
        %v831 = vadd.f32 %v825, %v829
        %v832 = vadd.f32 %v826, %v830
        %s833 = sld [smem:[#allocation2 + $0x106]]
        %v834 = vstv %s833
        %v835 = vmul.f32 %v681, %v834
        %v836 = vmul.f32 %v686, %v834
        %v837 = vadd.f32 %v831, %v835
        %v838 = vadd.f32 %v832, %v836
        %v839 = vmax.f32 %v817, %v837
        %v840 = vmax.f32 %v818, %v838
        %s841 = sld [smem:[#allocation2 + $0x7]]
        %v842 = vstv %s841
        %v843 = vmul.f32 %v531, %v842
        %v844 = vmul.f32 %v536, %v842
        %s845 = sld [smem:[#allocation5 + $0x7]]
        %v846 = vstv %s845
        %v847 = vadd.f32 %v843, %v846
        %v848 = vadd.f32 %v844, %v846
        %s849 = sld [smem:[#allocation2 + $0x87]]
        %v850 = vstv %s849
        %v851 = vmul.f32 %v606, %v850
        %v852 = vmul.f32 %v611, %v850
        %v853 = vadd.f32 %v847, %v851
        %v854 = vadd.f32 %v848, %v852
        %s855 = sld [smem:[#allocation2 + $0x107]]
        %v856 = vstv %s855
        %v857 = vmul.f32 %v681, %v856
        %v858 = vmul.f32 %v686, %v856
        %v859 = vadd.f32 %v853, %v857
        %v860 = vadd.f32 %v854, %v858
        %v861 = vmax.f32 %v839, %v859
        %v862 = vmax.f32 %v840, %v860
        %v863 = vsub.f32 %v707, %v861
        %v864 = vsub.f32 %v708, %v862
        %v865 = vmul.f32 %v863, 1.442695
        %v866 = vpow.pop %v865
        %v867 = vmul.f32 %v864, 1.442695
        %v868 = vpow.pop %v867
        %v869 = vadd.f32 %v866, 0.0
        %v870 = vadd.f32 %v868, 0.0
        %vm871 = vcmp.eq.s32.totalorder %v363, 0
        %vm872 = vcmp.eq.s32.totalorder %v364, 0
        %v873 = vsel %vm871, %v707, 0.0
        %v874 = vsel %vm872, %v708, 0.0
        %v875 = vadd.f32 %v873, 0.0
        %v876 = vadd.f32 %v874, 0.0
        %v877 = vsub.f32 %v727, %v861
        %v878 = vsub.f32 %v728, %v862
        %v879 = vmul.f32 %v877, 1.442695
        %v880 = vpow.pop %v879
        %v881 = vmul.f32 %v878, 1.442695
        %v882 = vpow.pop %v881
        %v883 = vadd.f32 %v869, %v880
        %v884 = vadd.f32 %v870, %v882
        %vm885 = vcmp.eq.s32.totalorder %v363, 1
        %vm886 = vcmp.eq.s32.totalorder %v364, 1
        %v887 = vsel %vm885, %v727, 0.0
        %v888 = vsel %vm886, %v728, 0.0
        %v889 = vadd.f32 %v875, %v887
        %v890 = vadd.f32 %v876, %v888
        %v891 = vsub.f32 %v749, %v861
        %v892 = vsub.f32 %v750, %v862
        %v893 = vmul.f32 %v891, 1.442695
        %v894 = vpow.pop %v893
        %v895 = vmul.f32 %v892, 1.442695
        %v896 = vpow.pop %v895
        %v897 = vadd.f32 %v883, %v894
        %v898 = vadd.f32 %v884, %v896
        %vm899 = vcmp.eq.s32.totalorder %v363, 2
        %vm900 = vcmp.eq.s32.totalorder %v364, 2
        %v901 = vsel %vm899, %v749, 0.0
        %v902 = vsel %vm900, %v750, 0.0
        %v903 = vadd.f32 %v889, %v901
        %v904 = vadd.f32 %v890, %v902
        %v905 = vsub.f32 %v771, %v861
        %v906 = vsub.f32 %v772, %v862
        %v907 = vmul.f32 %v905, 1.442695
        %v908 = vpow.pop %v907
        %v909 = vmul.f32 %v906, 1.442695
        %v910 = vpow.pop %v909
        %v911 = vadd.f32 %v897, %v908
        %v912 = vadd.f32 %v898, %v910
        %vm913 = vcmp.eq.s32.totalorder %v363, 3
        %vm914 = vcmp.eq.s32.totalorder %v364, 3
        %v915 = vsel %vm913, %v771, 0.0
        %v916 = vsel %vm914, %v772, 0.0
        %v917 = vadd.f32 %v903, %v915
        %v918 = vadd.f32 %v904, %v916
        %v919 = vsub.f32 %v793, %v861
        %v920 = vsub.f32 %v794, %v862
        %v921 = vmul.f32 %v919, 1.442695
        %v922 = vpow.pop %v921
        %v923 = vmul.f32 %v920, 1.442695
        %v924 = vpow.pop %v923
        %v925 = vadd.f32 %v911, %v922
        %v926 = vadd.f32 %v912, %v924
        %vm927 = vcmp.eq.s32.totalorder %v363, 4
        %vm928 = vcmp.eq.s32.totalorder %v364, 4
        %v929 = vsel %vm927, %v793, 0.0
        %v930 = vsel %vm928, %v794, 0.0
        %v931 = vadd.f32 %v917, %v929
        %v932 = vadd.f32 %v918, %v930
        %v933 = vsub.f32 %v815, %v861
        %v934 = vsub.f32 %v816, %v862
        %v935 = vmul.f32 %v933, 1.442695
        %v936 = vpow.pop %v935
        %v937 = vmul.f32 %v934, 1.442695
        %v938 = vpow.pop %v937
        %v939 = vadd.f32 %v925, %v936
        %v940 = vadd.f32 %v926, %v938
        %vm941 = vcmp.eq.s32.totalorder %v363, 5
        %vm942 = vcmp.eq.s32.totalorder %v364, 5
        %v943 = vsel %vm941, %v815, 0.0
        %v944 = vsel %vm942, %v816, 0.0
        %v945 = vadd.f32 %v931, %v943
        %v946 = vadd.f32 %v932, %v944
        %v947 = vsub.f32 %v837, %v861
        %v948 = vsub.f32 %v838, %v862
        %v949 = vmul.f32 %v947, 1.442695
        %v950 = vpow.pop %v949
        %v951 = vmul.f32 %v948, 1.442695
        %v952 = vpow.pop %v951
        %v953 = vadd.f32 %v939, %v950
        %v954 = vadd.f32 %v940, %v952
        %vm955 = vcmp.eq.s32.totalorder %v363, 6
        %vm956 = vcmp.eq.s32.totalorder %v364, 6
        %v957 = vsel %vm955, %v837, 0.0
        %v958 = vsel %vm956, %v838, 0.0
        %v959 = vadd.f32 %v945, %v957
        %v960 = vadd.f32 %v946, %v958
        %v961 = vsub.f32 %v859, %v861
        %v962 = vsub.f32 %v860, %v862
        %v963 = vmul.f32 %v961, 1.442695
        %v964 = vpow.pop %v963
        %v965 = vmul.f32 %v962, 1.442695
        %v966 = vpow.pop %v965
        %v967 = vadd.f32 %v953, %v964
        %v968 = vadd.f32 %v954, %v966
        %vm969 = vcmp.eq.s32.totalorder %v363, 7
        %vm970 = vcmp.eq.s32.totalorder %v364, 7
        %v971 = vsel %vm969, %v859, 0.0
        %v972 = vsel %vm970, %v860, 0.0
        %v973 = vadd.f32 %v959, %v971
        %v974 = vadd.f32 %v960, %v972
        %v975 = vlog2.pop %v967
        %v976 = vmul.f32 %v975, 0.6931472
        %v977 = vlog2.pop %v968
        %v978 = vmul.f32 %v977, 0.6931472
        %v979 = vadd.f32 %v861, %v976
        %v980 = vadd.f32 %v862, %v978
        %vm981 = vcmp.ge.s32.totalorder %v363, 0
        %vm982 = vcmp.ge.s32.totalorder %v364, 0
        %v983 = vsel %vm981, 1, 0
        %v984 = vsel %vm982, 1, 0
        %v985 = vcvt.s32.f32 %v983
        %v986 = vcvt.s32.f32 %v984
        %v987 = vsub.f32 %v979, %v973
        %v988 = vsub.f32 %v980, %v974
        %v989 = vmul.f32 %v987, %v985
        %v990 = vmul.f32 %v988, %v986
        %vm991 = vcmask 261120
        %v992 = vsel %vm991, %v989, 0.0
        %993 = vadd.xlane.f32.xlu0 %v992
        %v994 = vpop.xlane.xlu0 %993
        %v995 = vsel %vm991, %v990, 0.0
        %996 = vadd.xlane.f32.xlu0 %v995
        %v997 = vpop.xlane.xlu0 %996
        %v998 = vadd.f32 %v994, %v997
        %v999 = vrot.slane %v998, 4
        %v1000 = vadd.f32 %v998, %v999
        %v1001 = vrot.slane %v1000, 2
        %v1002 = vadd.f32 %v1000, %v1001
        %v1003 = vrot.slane %v1002, 1
        %v1004 = vadd.f32 %v1002, %v1003
        %v1005 = vsel %vm991, %v985, 0.0
        %1006 = vadd.xlane.f32.xlu0 %v1005
        %v1007 = vpop.xlane.xlu0 %1006
        %v1008 = vsel %vm991, %v986, 0.0
        %1009 = vadd.xlane.f32.xlu0 %v1008
        %v1010 = vpop.xlane.xlu0 %1009
        %v1011 = vadd.f32 %v1007, %v1010
        %v1012 = vrot.slane %v1011, 4
        %v1013 = vadd.f32 %v1011, %v1012
        %v1014 = vrot.slane %v1013, 2
        %v1015 = vadd.f32 %v1013, %v1014
        %v1016 = vrot.slane %v1015, 1
        %v1017 = vadd.f32 %v1015, %v1016
        %vm1018 = vcmask 0
        %1019 = vst.msk [vmem:[%s334] sm:$0x1] %vm1018, %v1004
        %vm1020 = vcmask 8200
        %1021 = vst.msk [vmem:[%s334] sm:$0x1] %vm1020, %v1017
        %s1022 = sand.u32 %s189, 1
        %s1023 = scalar_lea.sflag [#allocation3], %s1022
        %s1024 = sand.u32 %s189, 1
        %s1025 = scalar_lea.vmem [#allocation7], %s1024
        // Predicated region
        $region53: #{tpu_custom_call.1} parent=43 // pred_check
          %p1026 = pneg %p199
        $region54: #{tpu_custom_call.1} parent=43 // pred_check_branch
          %1028 = sbr.rel (%p1026) target = $region56
        $region55: #{tpu_custom_call.1} parent=43 // pred_region
          %s1030 = ssub.s32 16, 16
          %1031 = vsyncadd %s1023, %s1030
          %s1032 = smul.addr %s26, 2
          %s1033 = sadd.s32 %s27, %s1032
          %s1034 = smul.addr %s1033, 16
          %s1035 = scalar_lea.hbm %s6, %s1034
          %s1037 = sshll.u32 %s1025, 4
          %s1038 = int_to_ptr.vmem [resolvable:$true] %s1037
          %1040 = dma.vmem_to_hbm [thread:$0]  %s1038, 16, %s1035, %s1023
        $region56: #{tpu_custom_call.1} parent=43 // pred_fallthru
          _
      $region44: #{tpu_custom_call.1} parent=5 // pred_fallthru
        _
      %p1041 = scmp.le.s32.totalorder 2, %s17
      // Predicated region
      $region57: #{tpu_custom_call.1} parent=5 // pred_check
        %p1042 = pneg %p1041
      $region58: #{tpu_custom_call.1} parent=5 // pred_check_branch
        %1044 = sbr.rel (%p1042) target = $region60
      $region59: #{tpu_custom_call.1} parent=5 // pred_region
        %s1045 = ssub.s32 %s17, 2
        // Predicated region
        $region61: #{tpu_custom_call.1} parent=59 // pred_check
          %p1046 = pneg %p205
        $region62: #{tpu_custom_call.1} parent=59 // pred_check_branch
          %1048 = sbr.rel (%p1046) target = $region64
        $region63: #{tpu_custom_call.1} parent=59 // pred_region
          %s1049 = sand.u32 %s190, 1
          %s1050 = scalar_lea.sflag [#allocation3], %s1049
          %s1051 = sand.u32 %s190, 1
          %s1052 = scalar_lea.vmem [#allocation7], %s1051
          %1053 = dma.done %s1050, 16
        $region64: #{tpu_custom_call.1} parent=59 // pred_fallthru
          _
      $region60: #{tpu_custom_call.1} parent=5 // pred_fallthru
        _
    $region6: #{tpu_custom_call.1} parent=1 // loop_footer
      %s21 = sadd.s32 1, %s17
    $region7: #{tpu_custom_call.1} parent=1 // loop_footer_branch
      %16 = sbr.rel target = $region3
    $region8: #{tpu_custom_call.1} parent=1 // loop_exit
      _
    %1054 = vsyncpa [#allocation3], 1
    %s1055 = scalar_lea.sflag [#allocation3], 1
    %1056 = vsyncpa %s1055, 1
    %1057 = vsyncpa [#allocation4], 1
    %s1058 = scalar_lea.sflag [#allocation4], 1
    %1059 = vsyncpa %s1058, 1
    %1060 = vsyncpa [#allocation6], 1

</llo_original>
